<compile_context>
chip_gen: v6e
topology: v6e:2x2x1
jax: 0.10.0
libtpu: 0.0.40
codegen_flags: <defaults>
</compile_context>

<pallas_src>
import jax
import jax.numpy as jnp
from jax.experimental import pallas as pl
from jax.experimental.pallas import tpu as pltpu

IN_DIM = 28 * 28          # 784 (PyTorch flatten width) -- full K dim, unpadded
HID = 512
OUT_DIM = 10
OUT_PAD = 128             # lane-dense output width; logits sliced to 10 outside
TILE_B_MAX = 512          # batch tile upper bound (~10 MiB VMEM at 512)


def _round_up(x, m):
    return (x + m - 1) // m * m


def _cdiv(a, b):
    return (a + b - 1) // b


def mlp_kernel(x_ref, w1_ref, s1_ref, b1_ref, w2_ref, s2_ref, b2_ref,
               w3_ref, s3_ref, b3_ref, o_ref):
    # Layer 1: (tb,784)f32 -> bf16, int8 weights -> bf16; MXU acc in f32.
    x = x_ref[...].astype(jnp.bfloat16)
    h1 = jnp.dot(x, w1_ref[...].astype(jnp.bfloat16),
                 preferred_element_type=jnp.float32)
    h1 = jnp.maximum(h1 * s1_ref[...] + b1_ref[...], 0.0)   # dequant + bias + ReLU (f32)
    # Layer 2.
    h2 = jnp.dot(h1.astype(jnp.bfloat16), w2_ref[...].astype(jnp.bfloat16),
                 preferred_element_type=jnp.float32)
    h2 = jnp.maximum(h2 * s2_ref[...] + b2_ref[...], 0.0)
    # Layer 3: logits padded to 128 lanes (unmasked stores).
    logits = jnp.dot(h2.astype(jnp.bfloat16), w3_ref[...].astype(jnp.bfloat16),
                     preferred_element_type=jnp.float32)
    o_ref[...] = (logits * s3_ref[...] + b3_ref[...]).astype(o_ref.dtype)


def _quantize_int8(w):
    """Per-output-channel symmetric int8 quantization. w: (K, N) f32."""
    amax = jnp.max(jnp.abs(w), axis=0, keepdims=True)           # (1, N)
    scale = jnp.maximum(amax / 127.0, 1e-8).astype(jnp.float32)
    wq = jnp.clip(jnp.round(w / scale), -127.0, 127.0).astype(jnp.int8)
    return wq, scale


def prepare_params(params):
    """f32 PyTorch-layout params -> int8 weights + f32 scales/biases (done once)."""
    w1, b1, w2, b2, w3, b3 = params
    # Pad N of layer 3: 10 -> 128 with zero columns; zero-pad b3 to match.
    w3p = jnp.zeros((HID, OUT_PAD), jnp.float32).at[:, :OUT_DIM].set(w3)
    b3p = jnp.zeros((1, OUT_PAD), jnp.float32).at[:, :OUT_DIM].set(b3)
    w1q, s1 = _quantize_int8(w1)
    w2q, s2 = _quantize_int8(w2)
    w3q, s3 = _quantize_int8(w3p)
    return (w1q, s1, b1.astype(jnp.float32),
            w2q, s2, b2.astype(jnp.float32),
            w3q, s3, b3p)


@jax.jit
def neural_network_forward(x, prepared_params):
    """x: (B, 1, 28, 28) float32 -> logits (B, 10) float32."""
    w1, s1, b1, w2, s2, b2, w3, s3, b3 = prepared_params
    B = x.shape[0]
    x_flat = x.reshape(B, -1)                      # nn.Flatten (start_dim=1)

    # Balanced batch tiling: minimize padding waste, tile_b multiple of 8 (f32
    # sublane), capped by TILE_B_MAX.
    n_tiles = _cdiv(B, TILE_B_MAX)
    tile_b = _round_up(_cdiv(B, n_tiles), 8)
    B_pad = _round_up(B, tile_b)
    grid_b = B_pad // tile_b

    # Only pad batch rows (cheap) when needed; K stays at 784, cast in-kernel.
    if B_pad != B:
        x_flat = jnp.pad(x_flat, ((0, B_pad - B), (0, 0)))

    flops = 2 * B_pad * (IN_DIM * HID + HID * HID + HID * OUT_PAD)
    bytes_accessed = (
        (IN_DIM * HID + HID * HID + HID * OUT_PAD) * 1   # int8 weights
        + (HID + HID + HID + HID + OUT_PAD + OUT_PAD) * 4  # f32 scales + biases
        + B_pad * IN_DIM * 4                             # f32 input
        + B_pad * OUT_PAD * 4                            # f32 output
    )

    # Only let megacore split the batch when the grid is big enough to amortize
    # the duplicated weight DMA per core.
    dim_sem = ("parallel",) if grid_b >= 4 else ("arbitrary",)

    out = pl.pallas_call(
        mlp_kernel,
        out_shape=jax.ShapeDtypeStruct((B_pad, OUT_PAD), jnp.float32),
        grid_spec=pltpu.PrefetchScalarGridSpec(
            num_scalar_prefetch=0,
            grid=(grid_b,),
            in_specs=[
                pl.BlockSpec((tile_b, IN_DIM), lambda i: (i, 0)),     # x tile (f32)
                pl.BlockSpec((IN_DIM, HID), lambda i: (0, 0)),        # w1 int8 (resident)
                pl.BlockSpec((1, HID), lambda i: (0, 0)),             # s1
                pl.BlockSpec((1, HID), lambda i: (0, 0)),             # b1
                pl.BlockSpec((HID, HID), lambda i: (0, 0)),           # w2 int8 (resident)
                pl.BlockSpec((1, HID), lambda i: (0, 0)),             # s2
                pl.BlockSpec((1, HID), lambda i: (0, 0)),             # b2
                pl.BlockSpec((HID, OUT_PAD), lambda i: (0, 0)),       # w3 int8 (resident)
                pl.BlockSpec((1, OUT_PAD), lambda i: (0, 0)),         # s3
                pl.BlockSpec((1, OUT_PAD), lambda i: (0, 0)),         # b3
            ],
            out_specs=pl.BlockSpec((tile_b, OUT_PAD), lambda i: (i, 0)),
        ),
        compiler_params=pltpu.CompilerParams(
            dimension_semantics=dim_sem,
            vmem_limit_bytes=32 * 1024 * 1024),
        cost_estimate=pl.CostEstimate(
            flops=flops, transcendentals=0, bytes_accessed=bytes_accessed),
    )(x_flat, w1, s1, b1, w2, s2, b2, w3, s3, b3)

    return out[:B, :OUT_DIM]


def init_params(key):
    """nn.Linear-style init (uniform +/- 1/sqrt(fan_in)), weights as (in, out)
    so the kernel computes x @ W + b == PyTorch's x @ weight.T + bias."""
    ks = jax.random.split(key, 6)

    def linear(kw, kb, fan_in, fan_out):
        bound = 1.0 / jnp.sqrt(jnp.float32(fan_in))
        w = jax.random.uniform(kw, (fan_in, fan_out), jnp.float32, -bound, bound)
        b = jax.random.uniform(kb, (1, fan_out), jnp.float32, -bound, bound)
        return w, b

    w1, b1 = linear(ks[0], ks[1], IN_DIM, HID)
    w2, b2 = linear(ks[2], ks[3], HID, HID)
    w3, b3 = linear(ks[4], ks[5], HID, OUT_DIM)
    return (w1, b1, w2, b2, w3, b3)


if __name__ == "__main__":
    key = jax.random.PRNGKey(0)
    k_params, k_x = jax.random.split(key)
    params = init_params(k_params)
    prepared = prepare_params(params)

    B = 8
    x = jax.random.normal(k_x, (B, 1, 28, 28), jnp.float32)

    logits = neural_network_forward(x, prepared)
    jax.block_until_ready(logits)
    assert logits.shape == (B, OUT_DIM)

    # Reference in plain JAX using the same quantized operands the kernel sees
    # (bf16 MXU operands, f32 accumulation, scale folded into the epilogue), so
    # only accumulation-order noise remains.
    w1q, s1, b1, w2q, s2, b2, w3q, s3, b3 = prepared
    bf = lambda a: a.astype(jnp.bfloat16).astype(jnp.float32)
    hi = jax.lax.Precision.HIGHEST
    h = bf(x.reshape(B, -1))
    h = jnp.maximum(jnp.dot(h, w1q.astype(jnp.float32), precision=hi) * s1 + b1, 0.0)
    h = bf(h)
    h = jnp.maximum(jnp.dot(h, w2q.astype(jnp.float32), precision=hi) * s2 + b2, 0.0)
    h = bf(h)
    ref = (jnp.dot(h, w3q.astype(jnp.float32), precision=hi) * s3 + b3)[:, :OUT_DIM]

    assert jnp.allclose(logits, ref, atol=1e-2, rtol=1e-2), (
        float(jnp.max(jnp.abs(logits - ref))))

    print("KERNEL_OK")
</pallas_src>

<mosaic_0001>
module attributes {stable_mosaic.version = 11 : i64} {
  func.func @mlp_kernel(%arg0: i32, %arg1: memref<8x784xf32, #tpu.memory_space<vmem>>, %arg2: memref<784x512xi8, #tpu.memory_space<vmem>>, %arg3: memref<1x512xf32, #tpu.memory_space<vmem>>, %arg4: memref<1x512xf32, #tpu.memory_space<vmem>>, %arg5: memref<512x512xi8, #tpu.memory_space<vmem>>, %arg6: memref<1x512xf32, #tpu.memory_space<vmem>>, %arg7: memref<1x512xf32, #tpu.memory_space<vmem>>, %arg8: memref<512x128xi8, #tpu.memory_space<vmem>>, %arg9: memref<1x128xf32, #tpu.memory_space<vmem>>, %arg10: memref<1x128xf32, #tpu.memory_space<vmem>>, %arg11: memref<8x128xf32, #tpu.memory_space<vmem>>) attributes {dimension_semantics = [#tpu.dimension_semantics<arbitrary>], iteration_bounds = array<i64: 1>, scalar_prefetch = 0 : i64, scratch_operands = 0 : i64, tpu.core_type = #tpu.core_type<tc>, window_params = [{transform_indices = @transform_0, window_bounds = array<i64: 8, 784>}, {pipeline_mode = #tpu.pipeline_mode<synchronous>, transform_indices = @transform_1, window_bounds = array<i64: 784, 512>}, {pipeline_mode = #tpu.pipeline_mode<synchronous>, transform_indices = @transform_2, window_bounds = array<i64: 1, 512>}, {pipeline_mode = #tpu.pipeline_mode<synchronous>, transform_indices = @transform_3, window_bounds = array<i64: 1, 512>}, {pipeline_mode = #tpu.pipeline_mode<synchronous>, transform_indices = @transform_4, window_bounds = array<i64: 512, 512>}, {pipeline_mode = #tpu.pipeline_mode<synchronous>, transform_indices = @transform_5, window_bounds = array<i64: 1, 512>}, {pipeline_mode = #tpu.pipeline_mode<synchronous>, transform_indices = @transform_6, window_bounds = array<i64: 1, 512>}, {pipeline_mode = #tpu.pipeline_mode<synchronous>, transform_indices = @transform_7, window_bounds = array<i64: 512, 128>}, {pipeline_mode = #tpu.pipeline_mode<synchronous>, transform_indices = @transform_8, window_bounds = array<i64: 1, 128>}, {pipeline_mode = #tpu.pipeline_mode<synchronous>, transform_indices = @transform_9, window_bounds = array<i64: 1, 128>}, {transform_indices = @transform_10, window_bounds = array<i64: 8, 128>}]} {
    %c0 = arith.constant 0 : index
    %c0_0 = arith.constant 0 : index
    %0 = vector.load %arg1[%c0, %c0_0] : memref<8x784xf32, #tpu.memory_space<vmem>>, vector<8x784xf32>
    %1 = arith.truncf %0 : vector<8x784xf32> to vector<8x784xbf16>
    %c0_1 = arith.constant 0 : index
    %c0_2 = arith.constant 0 : index
    %2 = vector.load %arg2[%c0_1, %c0_2] : memref<784x512xi8, #tpu.memory_space<vmem>>, vector<784x512xi8>
    %3 = arith.sitofp %2 : vector<784x512xi8> to vector<784x512xbf16>
    %cst = arith.constant dense<0.000000e+00> : vector<8x512xf32>
    %4 = tpu.matmul %1, %3, %cst {dimension_numbers = #tpu.dot_dimension_numbers<[1], [0], [0], [1], [0, 0, 1, 1], [], []>} : vector<8x784xbf16>, vector<784x512xbf16>, vector<8x512xf32> -> vector<8x512xf32>
    %c0_3 = arith.constant 0 : index
    %c0_4 = arith.constant 0 : index
    %5 = vector.load %arg3[%c0_3, %c0_4] : memref<1x512xf32, #tpu.memory_space<vmem>>, vector<1x512xf32>
    %6 = vector.broadcast %5 : vector<1x512xf32> to vector<8x512xf32>
    %7 = arith.mulf %4, %6 : vector<8x512xf32>
    %c0_5 = arith.constant 0 : index
    %c0_6 = arith.constant 0 : index
    %8 = vector.load %arg4[%c0_5, %c0_6] : memref<1x512xf32, #tpu.memory_space<vmem>>, vector<1x512xf32>
    %9 = vector.broadcast %8 : vector<1x512xf32> to vector<8x512xf32>
    %10 = arith.addf %7, %9 : vector<8x512xf32>
    %cst_7 = arith.constant 0.000000e+00 : f32
    %11 = vector.broadcast %cst_7 : f32 to vector<8x512xf32>
    %12 = arith.maximumf %10, %11 : vector<8x512xf32>
    %13 = arith.truncf %12 : vector<8x512xf32> to vector<8x512xbf16>
    %c0_8 = arith.constant 0 : index
    %c0_9 = arith.constant 0 : index
    %14 = vector.load %arg5[%c0_8, %c0_9] : memref<512x512xi8, #tpu.memory_space<vmem>>, vector<512x512xi8>
    %15 = arith.sitofp %14 : vector<512x512xi8> to vector<512x512xbf16>
    %cst_10 = arith.constant dense<0.000000e+00> : vector<8x512xf32>
    %16 = tpu.matmul %13, %15, %cst_10 {dimension_numbers = #tpu.dot_dimension_numbers<[1], [0], [0], [1], [0, 0, 1, 1], [], []>} : vector<8x512xbf16>, vector<512x512xbf16>, vector<8x512xf32> -> vector<8x512xf32>
    %c0_11 = arith.constant 0 : index
    %c0_12 = arith.constant 0 : index
    %17 = vector.load %arg6[%c0_11, %c0_12] : memref<1x512xf32, #tpu.memory_space<vmem>>, vector<1x512xf32>
    %18 = vector.broadcast %17 : vector<1x512xf32> to vector<8x512xf32>
    %19 = arith.mulf %16, %18 : vector<8x512xf32>
    %c0_13 = arith.constant 0 : index
    %c0_14 = arith.constant 0 : index
    %20 = vector.load %arg7[%c0_13, %c0_14] : memref<1x512xf32, #tpu.memory_space<vmem>>, vector<1x512xf32>
    %21 = vector.broadcast %20 : vector<1x512xf32> to vector<8x512xf32>
    %22 = arith.addf %19, %21 : vector<8x512xf32>
    %cst_15 = arith.constant 0.000000e+00 : f32
    %23 = vector.broadcast %cst_15 : f32 to vector<8x512xf32>
    %24 = arith.maximumf %22, %23 : vector<8x512xf32>
    %25 = arith.truncf %24 : vector<8x512xf32> to vector<8x512xbf16>
    %c0_16 = arith.constant 0 : index
    %c0_17 = arith.constant 0 : index
    %26 = vector.load %arg8[%c0_16, %c0_17] : memref<512x128xi8, #tpu.memory_space<vmem>>, vector<512x128xi8>
    %27 = arith.sitofp %26 : vector<512x128xi8> to vector<512x128xbf16>
    %cst_18 = arith.constant dense<0.000000e+00> : vector<8x128xf32>
    %28 = tpu.matmul %25, %27, %cst_18 {dimension_numbers = #tpu.dot_dimension_numbers<[1], [0], [0], [1], [0, 0, 1, 1], [], []>} : vector<8x512xbf16>, vector<512x128xbf16>, vector<8x128xf32> -> vector<8x128xf32>
    %c0_19 = arith.constant 0 : index
    %c0_20 = arith.constant 0 : index
    %29 = vector.load %arg9[%c0_19, %c0_20] : memref<1x128xf32, #tpu.memory_space<vmem>>, vector<1x128xf32>
    %30 = vector.broadcast %29 : vector<1x128xf32> to vector<8x128xf32>
    %31 = arith.mulf %28, %30 : vector<8x128xf32>
    %c0_21 = arith.constant 0 : index
    %c0_22 = arith.constant 0 : index
    %32 = vector.load %arg10[%c0_21, %c0_22] : memref<1x128xf32, #tpu.memory_space<vmem>>, vector<1x128xf32>
    %33 = vector.broadcast %32 : vector<1x128xf32> to vector<8x128xf32>
    %34 = arith.addf %31, %33 : vector<8x128xf32>
    %c0_23 = arith.constant 0 : index
    %c0_24 = arith.constant 0 : index
    %35 = vector.load %arg11[%c0_23, %c0_24] : memref<8x128xf32, #tpu.memory_space<vmem>>, vector<8x128xf32>
    tpu.vector_store %arg11[%c0_23, %c0_24], %34 {strides = array<i32>} : memref<8x128xf32, #tpu.memory_space<vmem>>, vector<8x128xf32>,
    return
  }
  func.func @transform_0(%arg0: i32) -> (i32, i32) {
    %c0_i32 = arith.constant 0 : i32
    %c0_i32_0 = arith.constant 0 : i32
    return %arg0, %c0_i32 : i32, i32
  }
  func.func @transform_1(%arg0: i32) -> (i32, i32) {
    %c0_i32 = arith.constant 0 : i32
    %c0_i32_0 = arith.constant 0 : i32
    %c0_i32_1 = arith.constant 0 : i32
    return %c0_i32, %c0_i32_0 : i32, i32
  }
  func.func @transform_2(%arg0: i32) -> (i32, i32) {
    %c0_i32 = arith.constant 0 : i32
    %c0_i32_0 = arith.constant 0 : i32
    %c0_i32_1 = arith.constant 0 : i32
    return %c0_i32, %c0_i32_0 : i32, i32
  }
  func.func @transform_3(%arg0: i32) -> (i32, i32) {
    %c0_i32 = arith.constant 0 : i32
    %c0_i32_0 = arith.constant 0 : i32
    %c0_i32_1 = arith.constant 0 : i32
    return %c0_i32, %c0_i32_0 : i32, i32
  }
  func.func @transform_4(%arg0: i32) -> (i32, i32) {
    %c0_i32 = arith.constant 0 : i32
    %c0_i32_0 = arith.constant 0 : i32
    %c0_i32_1 = arith.constant 0 : i32
    return %c0_i32, %c0_i32_0 : i32, i32
  }
  func.func @transform_5(%arg0: i32) -> (i32, i32) {
    %c0_i32 = arith.constant 0 : i32
    %c0_i32_0 = arith.constant 0 : i32
    %c0_i32_1 = arith.constant 0 : i32
    return %c0_i32, %c0_i32_0 : i32, i32
  }
  func.func @transform_6(%arg0: i32) -> (i32, i32) {
    %c0_i32 = arith.constant 0 : i32
    %c0_i32_0 = arith.constant 0 : i32
    %c0_i32_1 = arith.constant 0 : i32
    return %c0_i32, %c0_i32_0 : i32, i32
  }
  func.func @transform_7(%arg0: i32) -> (i32, i32) {
    %c0_i32 = arith.constant 0 : i32
    %c0_i32_0 = arith.constant 0 : i32
    %c0_i32_1 = arith.constant 0 : i32
    return %c0_i32, %c0_i32_0 : i32, i32
  }
  func.func @transform_8(%arg0: i32) -> (i32, i32) {
    %c0_i32 = arith.constant 0 : i32
    %c0_i32_0 = arith.constant 0 : i32
    %c0_i32_1 = arith.constant 0 : i32
    return %c0_i32, %c0_i32_0 : i32, i32
  }
  func.func @transform_9(%arg0: i32) -> (i32, i32) {
    %c0_i32 = arith.constant 0 : i32
    %c0_i32_0 = arith.constant 0 : i32
    %c0_i32_1 = arith.constant 0 : i32
    return %c0_i32, %c0_i32_0 : i32, i32
  }
  func.func @transform_10(%arg0: i32) -> (i32, i32) {
    %c0_i32 = arith.constant 0 : i32
    %c0_i32_0 = arith.constant 0 : i32
    return %arg0, %c0_i32 : i32, i32
  }
}

</mosaic_0001>

<llo_original>
// kernel: neural_network_forward.1
$region0: #{neural_network_forward.1}
  #allocation0 [shape = 'u32[]', space=smem, size = 0x4, offset = 0x4, fixed_abs, tag = 'smem constant byte address 0x4 - core index']
  #allocation1 [shape = 'u32[144,128]{1,0:T(1,128)}', space=vmem, size = 0x12000, scoped, tag = 'internal scratch']
  %s0 = inlined_call_operand.vmem [shape: f32[8,784], index: 0, kind: input, shape index: {}]
  %s1 = inlined_call_operand.vmem [shape: s8[784,512], index: 1, kind: input, shape index: {}]
  %s2 = inlined_call_operand.vmem [shape: f32[1,512], index: 2, kind: input, shape index: {}]
  %s3 = inlined_call_operand.vmem [shape: f32[1,512], index: 3, kind: input, shape index: {}]
  %s4 = inlined_call_operand.hbm [shape: s8[512,512], index: 4, kind: input, shape index: {}]
  %s5 = inlined_call_operand.vmem [shape: f32[1,512], index: 5, kind: input, shape index: {}]
  %s6 = inlined_call_operand.vmem [shape: f32[1,512], index: 6, kind: input, shape index: {}]
  %s7 = inlined_call_operand.hbm [shape: s8[512,128], index: 7, kind: input, shape index: {}]
  %s8 = inlined_call_operand.vmem [shape: f32[1,128], index: 8, kind: input, shape index: {}]
  %s9 = inlined_call_operand.vmem [shape: f32[1,128], index: 9, kind: input, shape index: {}]
  %s10 = inlined_call_operand.hbm [shape: f32[8,128], index: 10, kind: output, shape index: {}]
  %s11 = sld [smem:[#allocation0]]
  $region58: #{neural_network_forward.1} parent=0
    _
  %s13 = ssub.s32 1, %s11
  %s14 = scalar_select 0, %s13, %s11
  $region1: #{neural_network_forward.1} parent=0
    #allocation2 [shape = 'u8[262144]{0}', space=vmem, size = 0x40000, scoped, tag = 'input window, operand 4, single buffered']
    #allocation3 [shape = 's32[1]{0}', space=sflag, size = 0x4, scoped, tag = 'scoped memory for neural_network_forward.1']
    #allocation4 [shape = 's32[1]{0}', space=sflag, size = 0x4, scoped, tag = 'scoped memory for neural_network_forward.1']
    #allocation5 [shape = 'u8[65536]{0}', space=vmem, size = 0x10000, scoped, tag = 'input window, operand 7, single buffered']
    #allocation6 [shape = 's32[1]{0}', space=sflag, size = 0x4, scoped, tag = 'scoped memory for neural_network_forward.1']
    #allocation7 [shape = 'u8[4096]{0}', space=vmem, size = 0x1000, scoped, tag = 'output window, operand 0, single buffered']
    %15 = vsyncpa [#allocation3], 0
    %16 = vsyncpa [#allocation6], 0
    %17 = vsyncpa [#allocation4], 0
    // Predicated region
    $region2: #{neural_network_forward.1} parent=1 // pred_check
      _
    $region3: #{neural_network_forward.1} parent=1 // pred_check_branch
      %19 = sbr.rel (0) target = $region5
    $region4: #{neural_network_forward.1} parent=1 // pred_region
      _
    $region5: #{neural_network_forward.1} parent=1 // pred_fallthru
      _
    // Predicated region
    $region6: #{neural_network_forward.1} parent=1 // pred_check
      _
    $region7: #{neural_network_forward.1} parent=1 // pred_check_branch
      %21 = sbr.rel (0) target = $region9
    $region8: #{neural_network_forward.1} parent=1 // pred_region
      _
    $region9: #{neural_network_forward.1} parent=1 // pred_fallthru
      _
    // Predicated region
    $region10: #{neural_network_forward.1} parent=1 // pred_check
      _
    $region11: #{neural_network_forward.1} parent=1 // pred_check_branch
      %23 = sbr.rel (0) target = $region13
    $region12: #{neural_network_forward.1} parent=1 // pred_region
      _
    $region13: #{neural_network_forward.1} parent=1 // pred_fallthru
      _
    // Predicated region
    $region14: #{neural_network_forward.1} parent=1 // pred_check
      _
    $region15: #{neural_network_forward.1} parent=1 // pred_check_branch
      %25 = sbr.rel (0) target = $region17
    $region16: #{neural_network_forward.1} parent=1 // pred_region
      _
    $region17: #{neural_network_forward.1} parent=1 // pred_fallthru
      _
    // Predicated region
    $region18: #{neural_network_forward.1} parent=1 // pred_check
      _
    $region19: #{neural_network_forward.1} parent=1 // pred_check_branch
      %27 = sbr.rel (0) target = $region21
    $region20: #{neural_network_forward.1} parent=1 // pred_region
      %s29 = ssub.s32 8192, 8192
      %30 = vsyncadd [#allocation3], %s29
      %s31 = sshll.u32 [#allocation2], 4
      %s32 = int_to_ptr.vmem [resolvable:$true] %s31
      %37 = dma.hbm_to_vmem [thread:$0]  %s4, 8192, %s32, [#allocation3], 512, 512, 32
    $region21: #{neural_network_forward.1} parent=1 // pred_fallthru
      _
    // Predicated region
    $region22: #{neural_network_forward.1} parent=1 // pred_check
      _
    $region23: #{neural_network_forward.1} parent=1 // pred_check_branch
      %39 = sbr.rel (0) target = $region25
    $region24: #{neural_network_forward.1} parent=1 // pred_region
      _
    $region25: #{neural_network_forward.1} parent=1 // pred_fallthru
      _
    // Predicated region
    $region26: #{neural_network_forward.1} parent=1 // pred_check
      _
    $region27: #{neural_network_forward.1} parent=1 // pred_check_branch
      %41 = sbr.rel (0) target = $region29
    $region28: #{neural_network_forward.1} parent=1 // pred_region
      _
    $region29: #{neural_network_forward.1} parent=1 // pred_fallthru
      _
    // Predicated region
    $region30: #{neural_network_forward.1} parent=1 // pred_check
      _
    $region31: #{neural_network_forward.1} parent=1 // pred_check_branch
      %43 = sbr.rel (0) target = $region33
    $region32: #{neural_network_forward.1} parent=1 // pred_region
      %s45 = ssub.s32 2048, 2048
      %46 = vsyncadd [#allocation6], %s45
      %s47 = sshll.u32 [#allocation5], 4
      %s48 = int_to_ptr.vmem [resolvable:$true] %s47
      %53 = dma.hbm_to_vmem [thread:$0]  %s7, 2048, %s48, [#allocation6], 128, 128, 8
    $region33: #{neural_network_forward.1} parent=1 // pred_fallthru
      _
    // Predicated region
    $region34: #{neural_network_forward.1} parent=1 // pred_check
      _
    $region35: #{neural_network_forward.1} parent=1 // pred_check_branch
      %55 = sbr.rel (0) target = $region37
    $region36: #{neural_network_forward.1} parent=1 // pred_region
      _
    $region37: #{neural_network_forward.1} parent=1 // pred_fallthru
      _
    // Predicated region
    $region38: #{neural_network_forward.1} parent=1 // pred_check
      _
    $region39: #{neural_network_forward.1} parent=1 // pred_check_branch
      %57 = sbr.rel (0) target = $region41
    $region40: #{neural_network_forward.1} parent=1 // pred_region
      _
    $region41: #{neural_network_forward.1} parent=1 // pred_fallthru
      _
    // Predicated region
    $region42: #{neural_network_forward.1} parent=1 // pred_check
      _
    $region43: #{neural_network_forward.1} parent=1 // pred_check_branch
      %59 = sbr.rel (0) target = $region45
    $region44: #{neural_network_forward.1} parent=1 // pred_region
      %60 = dma.done [#allocation3], 8192
    $region45: #{neural_network_forward.1} parent=1 // pred_fallthru
      _
    // Predicated region
    $region46: #{neural_network_forward.1} parent=1 // pred_check
      _
    $region47: #{neural_network_forward.1} parent=1 // pred_check_branch
      %62 = sbr.rel (0) target = $region49
    $region48: #{neural_network_forward.1} parent=1 // pred_region
      %63 = dma.done [#allocation6], 2048
    $region49: #{neural_network_forward.1} parent=1 // pred_fallthru
      _
    %v65 = vld [vmem:[%s0] sm:$0xff]
    %v66 = vld [vmem:[%s0 + $0x8] sm:$0xff]
    %v67 = vld [vmem:[%s0 + $0x10] sm:$0xff]
    %v68 = vld [vmem:[%s0 + $0x18] sm:$0xff]
    %v69 = vld [vmem:[%s0 + $0x20] sm:$0xff]
    %v70 = vld [vmem:[%s0 + $0x28] sm:$0xff]
    %v71 = vld [vmem:[%s0 + $0x30] sm:$0xff]
    %v72 = vpack.c.bf16 %v65, %v65
    %v73 = vpack.c.bf16 %v66, %v66
    %v74 = vpack.c.bf16 %v67, %v67
    %v75 = vpack.c.bf16 %v68, %v68
    %v76 = vpack.c.bf16 %v69, %v69
    %v77 = vpack.c.bf16 %v70, %v70
    %v78 = vpack.c.bf16 %v71, %v71
    %v79 = vld [vmem:[%s1] sm:$0xff]
    %v80 = vld [vmem:[%s1 + $0x8] sm:$0xff]
    %v81 = vld [vmem:[%s1 + $0x10] sm:$0xff]
    %v82 = vld [vmem:[%s1 + $0x18] sm:$0xff]
    %v83 = vld [vmem:[%s1 + $0x20] sm:$0xff]
    %v84 = vld [vmem:[%s1 + $0x28] sm:$0xff]
    %v85 = vld [vmem:[%s1 + $0x30] sm:$0xff]
    %v86 = vld [vmem:[%s1 + $0x38] sm:$0xff]
    %v87 = vld [vmem:[%s1 + $0x40] sm:$0xff]
    %v88 = vld [vmem:[%s1 + $0x48] sm:$0xff]
    %v89 = vld [vmem:[%s1 + $0x50] sm:$0xff]
    %v90 = vld [vmem:[%s1 + $0x58] sm:$0xff]
    %v91 = vld [vmem:[%s1 + $0x60] sm:$0xff]
    %v92 = vld [vmem:[%s1 + $0x68] sm:$0xff]
    %v93 = vld [vmem:[%s1 + $0x70] sm:$0xff]
    %v94 = vld [vmem:[%s1 + $0x78] sm:$0xff]
    %v95 = vld [vmem:[%s1 + $0x80] sm:$0xff]
    %v96 = vld [vmem:[%s1 + $0x88] sm:$0xff]
    %v97 = vld [vmem:[%s1 + $0x90] sm:$0xff]
    %v98 = vld [vmem:[%s1 + $0x98] sm:$0xff]
    %v99 = vld [vmem:[%s1 + $0xa0] sm:$0xff]
    %v100 = vld [vmem:[%s1 + $0xa8] sm:$0xff]
    %v101 = vld [vmem:[%s1 + $0xb0] sm:$0xff]
    %v102 = vld [vmem:[%s1 + $0xb8] sm:$0xff]
    %v103 = vld [vmem:[%s1 + $0xc0] sm:$0xff]
    %v104 = vld [vmem:[%s1 + $0xc8] sm:$0xff]
    %v105 = vld [vmem:[%s1 + $0xd0] sm:$0xff]
    %v106 = vld [vmem:[%s1 + $0xd8] sm:$0xff]
    %v107 = vld [vmem:[%s1 + $0xe0] sm:$0xff]
    %v108 = vld [vmem:[%s1 + $0xe8] sm:$0xff]
    %v109 = vld [vmem:[%s1 + $0xf0] sm:$0xff]
    %v110 = vld [vmem:[%s1 + $0xf8] sm:$0xff]
    %v111 = vld [vmem:[%s1 + $0x100] sm:$0xff]
    %v112 = vld [vmem:[%s1 + $0x108] sm:$0xff]
    %v113 = vld [vmem:[%s1 + $0x110] sm:$0xff]
    %v114 = vld [vmem:[%s1 + $0x118] sm:$0xff]
    %v115 = vld [vmem:[%s1 + $0x120] sm:$0xff]
    %v116 = vld [vmem:[%s1 + $0x128] sm:$0xff]
    %v117 = vld [vmem:[%s1 + $0x130] sm:$0xff]
    %v118 = vld [vmem:[%s1 + $0x138] sm:$0xff]
    %v119 = vld [vmem:[%s1 + $0x140] sm:$0xff]
    %v120 = vld [vmem:[%s1 + $0x148] sm:$0xff]
    %v121 = vld [vmem:[%s1 + $0x150] sm:$0xff]
    %v122 = vld [vmem:[%s1 + $0x158] sm:$0xff]
    %v123 = vld [vmem:[%s1 + $0x160] sm:$0xff]
    %v124 = vld [vmem:[%s1 + $0x168] sm:$0xff]
    %v125 = vld [vmem:[%s1 + $0x170] sm:$0xff]
    %v126 = vld [vmem:[%s1 + $0x178] sm:$0xff]
    %v127 = vld [vmem:[%s1 + $0x180] sm:$0xff]
    %v128 = vld [vmem:[%s1 + $0x188] sm:$0xff]
    %v129 = vld [vmem:[%s1 + $0x190] sm:$0xff]
    %v130 = vld [vmem:[%s1 + $0x198] sm:$0xff]
    %v131 = vld [vmem:[%s1 + $0x1a0] sm:$0xff]
    %v132 = vld [vmem:[%s1 + $0x1a8] sm:$0xff]
    %v133 = vld [vmem:[%s1 + $0x1b0] sm:$0xff]
    %v134 = vld [vmem:[%s1 + $0x1b8] sm:$0xff]
    %v135 = vld [vmem:[%s1 + $0x1c0] sm:$0xff]
    %v136 = vld [vmem:[%s1 + $0x1c8] sm:$0xff]
    %v137 = vld [vmem:[%s1 + $0x1d0] sm:$0xff]
    %v138 = vld [vmem:[%s1 + $0x1d8] sm:$0xff]
    %v139 = vld [vmem:[%s1 + $0x1e0] sm:$0xff]
    %v140 = vld [vmem:[%s1 + $0x1e8] sm:$0xff]
    %v141 = vld [vmem:[%s1 + $0x1f0] sm:$0xff]
    %v142 = vld [vmem:[%s1 + $0x1f8] sm:$0xff]
    %v143 = vld [vmem:[%s1 + $0x200] sm:$0xff]
    %v144 = vld [vmem:[%s1 + $0x208] sm:$0xff]
    %v145 = vld [vmem:[%s1 + $0x210] sm:$0xff]
    %v146 = vld [vmem:[%s1 + $0x218] sm:$0xff]
    %v147 = vld [vmem:[%s1 + $0x220] sm:$0xff]
    %v148 = vld [vmem:[%s1 + $0x228] sm:$0xff]
    %v149 = vld [vmem:[%s1 + $0x230] sm:$0xff]
    %v150 = vld [vmem:[%s1 + $0x238] sm:$0xff]
    %v151 = vld [vmem:[%s1 + $0x240] sm:$0xff]
    %v152 = vld [vmem:[%s1 + $0x248] sm:$0xff]
    %v153 = vld [vmem:[%s1 + $0x250] sm:$0xff]
    %v154 = vld [vmem:[%s1 + $0x258] sm:$0xff]
    %v155 = vld [vmem:[%s1 + $0x260] sm:$0xff]
    %v156 = vld [vmem:[%s1 + $0x268] sm:$0xff]
    %v157 = vld [vmem:[%s1 + $0x270] sm:$0xff]
    %v158 = vld [vmem:[%s1 + $0x278] sm:$0xff]
    %v159 = vld [vmem:[%s1 + $0x280] sm:$0xff]
    %v160 = vld [vmem:[%s1 + $0x288] sm:$0xff]
    %v161 = vld [vmem:[%s1 + $0x290] sm:$0xff]
    %v162 = vld [vmem:[%s1 + $0x298] sm:$0xff]
    %v163 = vld [vmem:[%s1 + $0x2a0] sm:$0xff]
    %v164 = vld [vmem:[%s1 + $0x2a8] sm:$0xff]
    %v165 = vld [vmem:[%s1 + $0x2b0] sm:$0xff]
    %v166 = vld [vmem:[%s1 + $0x2b8] sm:$0xff]
    %v167 = vld [vmem:[%s1 + $0x2c0] sm:$0xff]
    %v168 = vld [vmem:[%s1 + $0x2c8] sm:$0xff]
    %v169 = vld [vmem:[%s1 + $0x2d0] sm:$0xff]
    %v170 = vld [vmem:[%s1 + $0x2d8] sm:$0xff]
    %v171 = vld [vmem:[%s1 + $0x2e0] sm:$0xff]
    %v172 = vld [vmem:[%s1 + $0x2e8] sm:$0xff]
    %v173 = vld [vmem:[%s1 + $0x2f0] sm:$0xff]
    %v174 = vld [vmem:[%s1 + $0x2f8] sm:$0xff]
    %v175 = vld [vmem:[%s1 + $0x300] sm:$0xff]
    %v176 = vld [vmem:[%s1 + $0x308] sm:$0xff]
    %v177 = vunpack.c.l.s8.bf16 %v79
    %v178 = vunpack.c.h.s8.bf16 %v79
    %v179 = vunpack.c.l.s8.bf16 %v80
    %v180 = vunpack.c.h.s8.bf16 %v80
    %v181 = vunpack.c.l.s8.bf16 %v81
    %v182 = vunpack.c.h.s8.bf16 %v81
    %v183 = vunpack.c.l.s8.bf16 %v82
    %v184 = vunpack.c.h.s8.bf16 %v82
    %v185 = vunpack.c.l.s8.bf16 %v83
    %v186 = vunpack.c.h.s8.bf16 %v83
    %v187 = vunpack.c.l.s8.bf16 %v84
    %v188 = vunpack.c.h.s8.bf16 %v84
    %v189 = vunpack.c.l.s8.bf16 %v85
    %v190 = vunpack.c.h.s8.bf16 %v85
    %v191 = vunpack.c.l.s8.bf16 %v86
    %v192 = vunpack.c.h.s8.bf16 %v86
    %v193 = vunpack.c.l.s8.bf16 %v87
    %v194 = vunpack.c.h.s8.bf16 %v87
    %v195 = vunpack.c.l.s8.bf16 %v88
    %v196 = vunpack.c.h.s8.bf16 %v88
    %v197 = vunpack.c.l.s8.bf16 %v89
    %v198 = vunpack.c.h.s8.bf16 %v89
    %v199 = vunpack.c.l.s8.bf16 %v90
    %v200 = vunpack.c.h.s8.bf16 %v90
    %v201 = vunpack.c.l.s8.bf16 %v91
    %v202 = vunpack.c.h.s8.bf16 %v91
    %v203 = vunpack.c.l.s8.bf16 %v92
    %v204 = vunpack.c.h.s8.bf16 %v92
    %v205 = vunpack.c.l.s8.bf16 %v93
    %v206 = vunpack.c.h.s8.bf16 %v93
    %v207 = vunpack.c.l.s8.bf16 %v94
    %v208 = vunpack.c.h.s8.bf16 %v94
    %v209 = vunpack.c.l.s8.bf16 %v95
    %v210 = vunpack.c.h.s8.bf16 %v95
    %v211 = vunpack.c.l.s8.bf16 %v96
    %v212 = vunpack.c.h.s8.bf16 %v96
    %v213 = vunpack.c.l.s8.bf16 %v97
    %v214 = vunpack.c.h.s8.bf16 %v97
    %v215 = vunpack.c.l.s8.bf16 %v98
    %v216 = vunpack.c.h.s8.bf16 %v98
    %v217 = vunpack.c.l.s8.bf16 %v99
    %v218 = vunpack.c.h.s8.bf16 %v99
    %v219 = vunpack.c.l.s8.bf16 %v100
    %v220 = vunpack.c.h.s8.bf16 %v100
    %v221 = vunpack.c.l.s8.bf16 %v101
    %v222 = vunpack.c.h.s8.bf16 %v101
    %v223 = vunpack.c.l.s8.bf16 %v102
    %v224 = vunpack.c.h.s8.bf16 %v102
    %v225 = vunpack.c.l.s8.bf16 %v103
    %v226 = vunpack.c.h.s8.bf16 %v103
    %v227 = vunpack.c.l.s8.bf16 %v104
    %v228 = vunpack.c.h.s8.bf16 %v104
    %v229 = vunpack.c.l.s8.bf16 %v105
    %v230 = vunpack.c.h.s8.bf16 %v105
    %v231 = vunpack.c.l.s8.bf16 %v106
    %v232 = vunpack.c.h.s8.bf16 %v106
    %v233 = vunpack.c.l.s8.bf16 %v107
    %v234 = vunpack.c.h.s8.bf16 %v107
    %v235 = vunpack.c.l.s8.bf16 %v108
    %v236 = vunpack.c.h.s8.bf16 %v108
    %v237 = vunpack.c.l.s8.bf16 %v109
    %v238 = vunpack.c.h.s8.bf16 %v109
    %v239 = vunpack.c.l.s8.bf16 %v110
    %v240 = vunpack.c.h.s8.bf16 %v110
    %v241 = vunpack.c.l.s8.bf16 %v111
    %v242 = vunpack.c.h.s8.bf16 %v111
    %v243 = vunpack.c.l.s8.bf16 %v112
    %v244 = vunpack.c.h.s8.bf16 %v112
    %v245 = vunpack.c.l.s8.bf16 %v113
    %v246 = vunpack.c.h.s8.bf16 %v113
    %v247 = vunpack.c.l.s8.bf16 %v114
    %v248 = vunpack.c.h.s8.bf16 %v114
    %v249 = vunpack.c.l.s8.bf16 %v115
    %v250 = vunpack.c.h.s8.bf16 %v115
    %v251 = vunpack.c.l.s8.bf16 %v116
    %v252 = vunpack.c.h.s8.bf16 %v116
    %v253 = vunpack.c.l.s8.bf16 %v117
    %v254 = vunpack.c.h.s8.bf16 %v117
    %v255 = vunpack.c.l.s8.bf16 %v118
    %v256 = vunpack.c.h.s8.bf16 %v118
    %v257 = vunpack.c.l.s8.bf16 %v119
    %v258 = vunpack.c.h.s8.bf16 %v119
    %v259 = vunpack.c.l.s8.bf16 %v120
    %v260 = vunpack.c.h.s8.bf16 %v120
    %v261 = vunpack.c.l.s8.bf16 %v121
    %v262 = vunpack.c.h.s8.bf16 %v121
    %v263 = vunpack.c.l.s8.bf16 %v122
    %v264 = vunpack.c.h.s8.bf16 %v122
    %v265 = vunpack.c.l.s8.bf16 %v123
    %v266 = vunpack.c.h.s8.bf16 %v123
    %v267 = vunpack.c.l.s8.bf16 %v124
    %v268 = vunpack.c.h.s8.bf16 %v124
    %v269 = vunpack.c.l.s8.bf16 %v125
    %v270 = vunpack.c.h.s8.bf16 %v125
    %v271 = vunpack.c.l.s8.bf16 %v126
    %v272 = vunpack.c.h.s8.bf16 %v126
    %v273 = vunpack.c.l.s8.bf16 %v127
    %v274 = vunpack.c.h.s8.bf16 %v127
    %v275 = vunpack.c.l.s8.bf16 %v128
    %v276 = vunpack.c.h.s8.bf16 %v128
    %v277 = vunpack.c.l.s8.bf16 %v129
    %v278 = vunpack.c.h.s8.bf16 %v129
    %v279 = vunpack.c.l.s8.bf16 %v130
    %v280 = vunpack.c.h.s8.bf16 %v130
    %v281 = vunpack.c.l.s8.bf16 %v131
    %v282 = vunpack.c.h.s8.bf16 %v131
    %v283 = vunpack.c.l.s8.bf16 %v132
    %v284 = vunpack.c.h.s8.bf16 %v132
    %v285 = vunpack.c.l.s8.bf16 %v133
    %v286 = vunpack.c.h.s8.bf16 %v133
    %v287 = vunpack.c.l.s8.bf16 %v134
    %v288 = vunpack.c.h.s8.bf16 %v134
    %v289 = vunpack.c.l.s8.bf16 %v135
    %v290 = vunpack.c.h.s8.bf16 %v135
    %v291 = vunpack.c.l.s8.bf16 %v136
    %v292 = vunpack.c.h.s8.bf16 %v136
    %v293 = vunpack.c.l.s8.bf16 %v137
    %v294 = vunpack.c.h.s8.bf16 %v137
    %v295 = vunpack.c.l.s8.bf16 %v138
    %v296 = vunpack.c.h.s8.bf16 %v138
    %v297 = vunpack.c.l.s8.bf16 %v139
    %v298 = vunpack.c.h.s8.bf16 %v139
    %v299 = vunpack.c.l.s8.bf16 %v140
    %v300 = vunpack.c.h.s8.bf16 %v140
    %v301 = vunpack.c.l.s8.bf16 %v141
    %v302 = vunpack.c.h.s8.bf16 %v141
    %v303 = vunpack.c.l.s8.bf16 %v142
    %v304 = vunpack.c.h.s8.bf16 %v142
    %v305 = vunpack.c.l.s8.bf16 %v143
    %v306 = vunpack.c.h.s8.bf16 %v143
    %v307 = vunpack.c.l.s8.bf16 %v144
    %v308 = vunpack.c.h.s8.bf16 %v144
    %v309 = vunpack.c.l.s8.bf16 %v145
    %v310 = vunpack.c.h.s8.bf16 %v145
    %v311 = vunpack.c.l.s8.bf16 %v146
    %v312 = vunpack.c.h.s8.bf16 %v146
    %v313 = vunpack.c.l.s8.bf16 %v147
    %v314 = vunpack.c.h.s8.bf16 %v147
    %v315 = vunpack.c.l.s8.bf16 %v148
    %v316 = vunpack.c.h.s8.bf16 %v148
    %v317 = vunpack.c.l.s8.bf16 %v149
    %v318 = vunpack.c.h.s8.bf16 %v149
    %v319 = vunpack.c.l.s8.bf16 %v150
    %v320 = vunpack.c.h.s8.bf16 %v150
    %v321 = vunpack.c.l.s8.bf16 %v151
    %v322 = vunpack.c.h.s8.bf16 %v151
    %v323 = vunpack.c.l.s8.bf16 %v152
    %v324 = vunpack.c.h.s8.bf16 %v152
    %v325 = vunpack.c.l.s8.bf16 %v153
    %v326 = vunpack.c.h.s8.bf16 %v153
    %v327 = vunpack.c.l.s8.bf16 %v154
    %v328 = vunpack.c.h.s8.bf16 %v154
    %v329 = vunpack.c.l.s8.bf16 %v155
    %v330 = vunpack.c.h.s8.bf16 %v155
    %v331 = vunpack.c.l.s8.bf16 %v156
    %v332 = vunpack.c.h.s8.bf16 %v156
    %v333 = vunpack.c.l.s8.bf16 %v157
    %v334 = vunpack.c.h.s8.bf16 %v157
    %v335 = vunpack.c.l.s8.bf16 %v158
    %v336 = vunpack.c.h.s8.bf16 %v158
    %v337 = vunpack.c.l.s8.bf16 %v159
    %v338 = vunpack.c.h.s8.bf16 %v159
    %v339 = vunpack.c.l.s8.bf16 %v160
    %v340 = vunpack.c.h.s8.bf16 %v160
    %v341 = vunpack.c.l.s8.bf16 %v161
    %v342 = vunpack.c.h.s8.bf16 %v161
    %v343 = vunpack.c.l.s8.bf16 %v162
    %v344 = vunpack.c.h.s8.bf16 %v162
    %v345 = vunpack.c.l.s8.bf16 %v163
    %v346 = vunpack.c.h.s8.bf16 %v163
    %v347 = vunpack.c.l.s8.bf16 %v164
    %v348 = vunpack.c.h.s8.bf16 %v164
    %v349 = vunpack.c.l.s8.bf16 %v165
    %v350 = vunpack.c.h.s8.bf16 %v165
    %v351 = vunpack.c.l.s8.bf16 %v166
    %v352 = vunpack.c.h.s8.bf16 %v166
    %v353 = vunpack.c.l.s8.bf16 %v167
    %v354 = vunpack.c.h.s8.bf16 %v167
    %v355 = vunpack.c.l.s8.bf16 %v168
    %v356 = vunpack.c.h.s8.bf16 %v168
    %v357 = vunpack.c.l.s8.bf16 %v169
    %v358 = vunpack.c.h.s8.bf16 %v169
    %v359 = vunpack.c.l.s8.bf16 %v170
    %v360 = vunpack.c.h.s8.bf16 %v170
    %v361 = vunpack.c.l.s8.bf16 %v171
    %v362 = vunpack.c.h.s8.bf16 %v171
    %v363 = vunpack.c.l.s8.bf16 %v172
    %v364 = vunpack.c.h.s8.bf16 %v172
    %v365 = vunpack.c.l.s8.bf16 %v173
    %v366 = vunpack.c.h.s8.bf16 %v173
    %v367 = vunpack.c.l.s8.bf16 %v174
    %v368 = vunpack.c.h.s8.bf16 %v174
    %v369 = vunpack.c.l.s8.bf16 %v175
    %v370 = vunpack.c.h.s8.bf16 %v175
    %v371 = vunpack.c.l.s8.bf16 %v176
    %v372 = vunpack.c.h.s8.bf16 %v176
    %v569 = vunpack.c.l.b16 %v177
    %v570 = vunpack.c.h.b16 %v177
    %v571 = vunpack.c.l.b16 %v178
    %v572 = vunpack.c.h.b16 %v178
    %v573 = vunpack.c.l.b16 %v179
    %v574 = vunpack.c.h.b16 %v179
    %v575 = vunpack.c.l.b16 %v180
    %v576 = vunpack.c.h.b16 %v180
    %v577 = vunpack.c.l.b16 %v181
    %v578 = vunpack.c.h.b16 %v181
    %v579 = vunpack.c.l.b16 %v182
    %v580 = vunpack.c.h.b16 %v182
    %v581 = vunpack.c.l.b16 %v183
    %v582 = vunpack.c.h.b16 %v183
    %v583 = vunpack.c.l.b16 %v184
    %v584 = vunpack.c.h.b16 %v184
    %v585 = vunpack.c.l.b16 %v185
    %v586 = vunpack.c.h.b16 %v185
    %v587 = vunpack.c.l.b16 %v186
    %v588 = vunpack.c.h.b16 %v186
    %v589 = vunpack.c.l.b16 %v187
    %v590 = vunpack.c.h.b16 %v187
    %v591 = vunpack.c.l.b16 %v188
    %v592 = vunpack.c.h.b16 %v188
    %v593 = vunpack.c.l.b16 %v189
    %v594 = vunpack.c.h.b16 %v189
    %v595 = vunpack.c.l.b16 %v190
    %v596 = vunpack.c.h.b16 %v190
    %v597 = vunpack.c.l.b16 %v191
    %v598 = vunpack.c.h.b16 %v191
    %v599 = vunpack.c.l.b16 %v192
    %v600 = vunpack.c.h.b16 %v192
    %v601 = vunpack.c.l.b16 %v193
    %v602 = vunpack.c.h.b16 %v193
    %v603 = vunpack.c.l.b16 %v194
    %v604 = vunpack.c.h.b16 %v194
    %v605 = vunpack.c.l.b16 %v195
    %v606 = vunpack.c.h.b16 %v195
    %v607 = vunpack.c.l.b16 %v196
    %v608 = vunpack.c.h.b16 %v196
    %v609 = vunpack.c.l.b16 %v197
    %v610 = vunpack.c.h.b16 %v197
    %v611 = vunpack.c.l.b16 %v198
    %v612 = vunpack.c.h.b16 %v198
    %v613 = vunpack.c.l.b16 %v199
    %v614 = vunpack.c.h.b16 %v199
    %v615 = vunpack.c.l.b16 %v200
    %v616 = vunpack.c.h.b16 %v200
    %v617 = vunpack.c.l.b16 %v201
    %v618 = vunpack.c.h.b16 %v201
    %v619 = vunpack.c.l.b16 %v202
    %v620 = vunpack.c.h.b16 %v202
    %v621 = vunpack.c.l.b16 %v203
    %v622 = vunpack.c.h.b16 %v203
    %v623 = vunpack.c.l.b16 %v204
    %v624 = vunpack.c.h.b16 %v204
    %v625 = vunpack.c.l.b16 %v205
    %v626 = vunpack.c.h.b16 %v205
    %v627 = vunpack.c.l.b16 %v206
    %v628 = vunpack.c.h.b16 %v206
    %v629 = vunpack.c.l.b16 %v207
    %v630 = vunpack.c.h.b16 %v207
    %v631 = vunpack.c.l.b16 %v208
    %v632 = vunpack.c.h.b16 %v208
    %v633 = vunpack.c.l.b16 %v209
    %v634 = vunpack.c.h.b16 %v209
    %v635 = vunpack.c.l.b16 %v210
    %v636 = vunpack.c.h.b16 %v210
    %v637 = vunpack.c.l.b16 %v211
    %v638 = vunpack.c.h.b16 %v211
    %v639 = vunpack.c.l.b16 %v212
    %v640 = vunpack.c.h.b16 %v212
    %v641 = vunpack.c.l.b16 %v213
    %v642 = vunpack.c.h.b16 %v213
    %v643 = vunpack.c.l.b16 %v214
    %v644 = vunpack.c.h.b16 %v214
    %v645 = vunpack.c.l.b16 %v215
    %v646 = vunpack.c.h.b16 %v215
    %v647 = vunpack.c.l.b16 %v216
    %v648 = vunpack.c.h.b16 %v216
    %v649 = vunpack.c.l.b16 %v217
    %v650 = vunpack.c.h.b16 %v217
    %v651 = vunpack.c.l.b16 %v218
    %v652 = vunpack.c.h.b16 %v218
    %v653 = vunpack.c.l.b16 %v219
    %v654 = vunpack.c.h.b16 %v219
    %v655 = vunpack.c.l.b16 %v220
    %v656 = vunpack.c.h.b16 %v220
    %v657 = vunpack.c.l.b16 %v221
    %v658 = vunpack.c.h.b16 %v221
    %v659 = vunpack.c.l.b16 %v222
    %v660 = vunpack.c.h.b16 %v222
    %v661 = vunpack.c.l.b16 %v223
    %v662 = vunpack.c.h.b16 %v223
    %v663 = vunpack.c.l.b16 %v224
    %v664 = vunpack.c.h.b16 %v224
    %v665 = vunpack.c.l.b16 %v225
    %v666 = vunpack.c.h.b16 %v225
    %v667 = vunpack.c.l.b16 %v226
    %v668 = vunpack.c.h.b16 %v226
    %v669 = vunpack.c.l.b16 %v227
    %v670 = vunpack.c.h.b16 %v227
    %v671 = vunpack.c.l.b16 %v228
    %v672 = vunpack.c.h.b16 %v228
    %v673 = vunpack.c.l.b16 %v229
    %v674 = vunpack.c.h.b16 %v229
    %v675 = vunpack.c.l.b16 %v230
    %v676 = vunpack.c.h.b16 %v230
    %v677 = vunpack.c.l.b16 %v231
    %v678 = vunpack.c.h.b16 %v231
    %v679 = vunpack.c.l.b16 %v232
    %v680 = vunpack.c.h.b16 %v232
    %v681 = vunpack.c.l.b16 %v233
    %v682 = vunpack.c.h.b16 %v233
    %v683 = vunpack.c.l.b16 %v234
    %v684 = vunpack.c.h.b16 %v234
    %v685 = vunpack.c.l.b16 %v235
    %v686 = vunpack.c.h.b16 %v235
    %v687 = vunpack.c.l.b16 %v236
    %v688 = vunpack.c.h.b16 %v236
    %v689 = vunpack.c.l.b16 %v237
    %v690 = vunpack.c.h.b16 %v237
    %v691 = vunpack.c.l.b16 %v238
    %v692 = vunpack.c.h.b16 %v238
    %v693 = vunpack.c.l.b16 %v239
    %v694 = vunpack.c.h.b16 %v239
    %v695 = vunpack.c.l.b16 %v240
    %v696 = vunpack.c.h.b16 %v240
    %v697 = vunpack.c.l.b16 %v241
    %v698 = vunpack.c.h.b16 %v241
    %v699 = vunpack.c.l.b16 %v242
    %v700 = vunpack.c.h.b16 %v242
    %v701 = vunpack.c.l.b16 %v243
    %v702 = vunpack.c.h.b16 %v243
    %v703 = vunpack.c.l.b16 %v244
    %v704 = vunpack.c.h.b16 %v244
    %v705 = vunpack.c.l.b16 %v245
    %v706 = vunpack.c.h.b16 %v245
    %v707 = vunpack.c.l.b16 %v246
    %v708 = vunpack.c.h.b16 %v246
    %v709 = vunpack.c.l.b16 %v247
    %v710 = vunpack.c.h.b16 %v247
    %v711 = vunpack.c.l.b16 %v248
    %v712 = vunpack.c.h.b16 %v248
    %v713 = vunpack.c.l.b16 %v249
    %v714 = vunpack.c.h.b16 %v249
    %v715 = vunpack.c.l.b16 %v250
    %v716 = vunpack.c.h.b16 %v250
    %v717 = vunpack.c.l.b16 %v251
    %v718 = vunpack.c.h.b16 %v251
    %v719 = vunpack.c.l.b16 %v252
    %v720 = vunpack.c.h.b16 %v252
    %v721 = vunpack.c.l.b16 %v253
    %v722 = vunpack.c.h.b16 %v253
    %v723 = vunpack.c.l.b16 %v254
    %v724 = vunpack.c.h.b16 %v254
    %v725 = vunpack.c.l.b16 %v255
    %v726 = vunpack.c.h.b16 %v255
    %v727 = vunpack.c.l.b16 %v256
    %v728 = vunpack.c.h.b16 %v256
    %v729 = vunpack.c.l.b16 %v257
    %v730 = vunpack.c.h.b16 %v257
    %v731 = vunpack.c.l.b16 %v258
    %v732 = vunpack.c.h.b16 %v258
    %v733 = vunpack.c.l.b16 %v259
    %v734 = vunpack.c.h.b16 %v259
    %v735 = vunpack.c.l.b16 %v260
    %v736 = vunpack.c.h.b16 %v260
    %v737 = vunpack.c.l.b16 %v261
    %v738 = vunpack.c.h.b16 %v261
    %v739 = vunpack.c.l.b16 %v262
    %v740 = vunpack.c.h.b16 %v262
    %v741 = vunpack.c.l.b16 %v263
    %v742 = vunpack.c.h.b16 %v263
    %v743 = vunpack.c.l.b16 %v264
    %v744 = vunpack.c.h.b16 %v264
    %v745 = vunpack.c.l.b16 %v265
    %v746 = vunpack.c.h.b16 %v265
    %v747 = vunpack.c.l.b16 %v266
    %v748 = vunpack.c.h.b16 %v266
    %v749 = vunpack.c.l.b16 %v267
    %v750 = vunpack.c.h.b16 %v267
    %v751 = vunpack.c.l.b16 %v268
    %v752 = vunpack.c.h.b16 %v268
    %v753 = vunpack.c.l.b16 %v269
    %v754 = vunpack.c.h.b16 %v269
    %v755 = vunpack.c.l.b16 %v270
    %v756 = vunpack.c.h.b16 %v270
    %v757 = vunpack.c.l.b16 %v271
    %v758 = vunpack.c.h.b16 %v271
    %v759 = vunpack.c.l.b16 %v272
    %v760 = vunpack.c.h.b16 %v272
    %v761 = vunpack.c.l.b16 %v273
    %v762 = vunpack.c.h.b16 %v273
    %v763 = vunpack.c.l.b16 %v274
    %v764 = vunpack.c.h.b16 %v274
    %v765 = vunpack.c.l.b16 %v275
    %v766 = vunpack.c.h.b16 %v275
    %v767 = vunpack.c.l.b16 %v276
    %v768 = vunpack.c.h.b16 %v276
    %v769 = vunpack.c.l.b16 %v277
    %v770 = vunpack.c.h.b16 %v277
    %v771 = vunpack.c.l.b16 %v278
    %v772 = vunpack.c.h.b16 %v278
    %v773 = vunpack.c.l.b16 %v279
    %v774 = vunpack.c.h.b16 %v279
    %v775 = vunpack.c.l.b16 %v280
    %v776 = vunpack.c.h.b16 %v280
    %v777 = vunpack.c.l.b16 %v281
    %v778 = vunpack.c.h.b16 %v281
    %v779 = vunpack.c.l.b16 %v282
    %v780 = vunpack.c.h.b16 %v282
    %v781 = vunpack.c.l.b16 %v283
    %v782 = vunpack.c.h.b16 %v283
    %v783 = vunpack.c.l.b16 %v284
    %v784 = vunpack.c.h.b16 %v284
    %v785 = vunpack.c.l.b16 %v285
    %v786 = vunpack.c.h.b16 %v285
    %v787 = vunpack.c.l.b16 %v286
    %v788 = vunpack.c.h.b16 %v286
    %v789 = vunpack.c.l.b16 %v287
    %v790 = vunpack.c.h.b16 %v287
    %v791 = vunpack.c.l.b16 %v288
    %v792 = vunpack.c.h.b16 %v288
    %v793 = vunpack.c.l.b16 %v289
    %v794 = vunpack.c.h.b16 %v289
    %v795 = vunpack.c.l.b16 %v290
    %v796 = vunpack.c.h.b16 %v290
    %v797 = vunpack.c.l.b16 %v291
    %v798 = vunpack.c.h.b16 %v291
    %v799 = vunpack.c.l.b16 %v292
    %v800 = vunpack.c.h.b16 %v292
    %v801 = vunpack.c.l.b16 %v293
    %v802 = vunpack.c.h.b16 %v293
    %v803 = vunpack.c.l.b16 %v294
    %v804 = vunpack.c.h.b16 %v294
    %v805 = vunpack.c.l.b16 %v295
    %v806 = vunpack.c.h.b16 %v295
    %v807 = vunpack.c.l.b16 %v296
    %v808 = vunpack.c.h.b16 %v296
    %v809 = vunpack.c.l.b16 %v297
    %v810 = vunpack.c.h.b16 %v297
    %v811 = vunpack.c.l.b16 %v298
    %v812 = vunpack.c.h.b16 %v298
    %v813 = vunpack.c.l.b16 %v299
    %v814 = vunpack.c.h.b16 %v299
    %v815 = vunpack.c.l.b16 %v300
    %v816 = vunpack.c.h.b16 %v300
    %v817 = vunpack.c.l.b16 %v301
    %v818 = vunpack.c.h.b16 %v301
    %v819 = vunpack.c.l.b16 %v302
    %v820 = vunpack.c.h.b16 %v302
    %v821 = vunpack.c.l.b16 %v303
    %v822 = vunpack.c.h.b16 %v303
    %v823 = vunpack.c.l.b16 %v304
    %v824 = vunpack.c.h.b16 %v304
    %v825 = vunpack.c.l.b16 %v305
    %v826 = vunpack.c.h.b16 %v305
    %v827 = vunpack.c.l.b16 %v306
    %v828 = vunpack.c.h.b16 %v306
    %v829 = vunpack.c.l.b16 %v307
    %v830 = vunpack.c.h.b16 %v307
    %v831 = vunpack.c.l.b16 %v308
    %v832 = vunpack.c.h.b16 %v308
    %v833 = vunpack.c.l.b16 %v309
    %v834 = vunpack.c.h.b16 %v309
    %v835 = vunpack.c.l.b16 %v310
    %v836 = vunpack.c.h.b16 %v310
    %v837 = vunpack.c.l.b16 %v311
    %v838 = vunpack.c.h.b16 %v311
    %v839 = vunpack.c.l.b16 %v312
    %v840 = vunpack.c.h.b16 %v312
    %v841 = vunpack.c.l.b16 %v313
    %v842 = vunpack.c.h.b16 %v313
    %v843 = vunpack.c.l.b16 %v314
    %v844 = vunpack.c.h.b16 %v314
    %v845 = vunpack.c.l.b16 %v315
    %v846 = vunpack.c.h.b16 %v315
    %v847 = vunpack.c.l.b16 %v316
    %v848 = vunpack.c.h.b16 %v316
    %v849 = vunpack.c.l.b16 %v317
    %v850 = vunpack.c.h.b16 %v317
    %v851 = vunpack.c.l.b16 %v318
    %v852 = vunpack.c.h.b16 %v318
    %v853 = vunpack.c.l.b16 %v319
    %v854 = vunpack.c.h.b16 %v319
    %v855 = vunpack.c.l.b16 %v320
    %v856 = vunpack.c.h.b16 %v320
    %v857 = vunpack.c.l.b16 %v321
    %v858 = vunpack.c.h.b16 %v321
    %v859 = vunpack.c.l.b16 %v322
    %v860 = vunpack.c.h.b16 %v322
    %v861 = vunpack.c.l.b16 %v323
    %v862 = vunpack.c.h.b16 %v323
    %v863 = vunpack.c.l.b16 %v324
    %v864 = vunpack.c.h.b16 %v324
    %v865 = vunpack.c.l.b16 %v325
    %v866 = vunpack.c.h.b16 %v325
    %v867 = vunpack.c.l.b16 %v326
    %v868 = vunpack.c.h.b16 %v326
    %v869 = vunpack.c.l.b16 %v327
    %v870 = vunpack.c.h.b16 %v327
    %v871 = vunpack.c.l.b16 %v328
    %v872 = vunpack.c.h.b16 %v328
    %v873 = vunpack.c.l.b16 %v329
    %v874 = vunpack.c.h.b16 %v329
    %v875 = vunpack.c.l.b16 %v330
    %v876 = vunpack.c.h.b16 %v330
    %v877 = vunpack.c.l.b16 %v331
    %v878 = vunpack.c.h.b16 %v331
    %v879 = vunpack.c.l.b16 %v332
    %v880 = vunpack.c.h.b16 %v332
    %v881 = vunpack.c.l.b16 %v333
    %v882 = vunpack.c.h.b16 %v333
    %v883 = vunpack.c.l.b16 %v334
    %v884 = vunpack.c.h.b16 %v334
    %v885 = vunpack.c.l.b16 %v335
    %v886 = vunpack.c.h.b16 %v335
    %v887 = vunpack.c.l.b16 %v336
    %v888 = vunpack.c.h.b16 %v336
    %v889 = vunpack.c.l.b16 %v337
    %v890 = vunpack.c.h.b16 %v337
    %v891 = vunpack.c.l.b16 %v338
    %v892 = vunpack.c.h.b16 %v338
    %v893 = vunpack.c.l.b16 %v339
    %v894 = vunpack.c.h.b16 %v339
    %v895 = vunpack.c.l.b16 %v340
    %v896 = vunpack.c.h.b16 %v340
    %v897 = vunpack.c.l.b16 %v341
    %v898 = vunpack.c.h.b16 %v341
    %v899 = vunpack.c.l.b16 %v342
    %v900 = vunpack.c.h.b16 %v342
    %v901 = vunpack.c.l.b16 %v343
    %v902 = vunpack.c.h.b16 %v343
    %v903 = vunpack.c.l.b16 %v344
    %v904 = vunpack.c.h.b16 %v344
    %v905 = vunpack.c.l.b16 %v345
    %v906 = vunpack.c.h.b16 %v345
    %v907 = vunpack.c.l.b16 %v346
    %v908 = vunpack.c.h.b16 %v346
    %v909 = vunpack.c.l.b16 %v347
    %v910 = vunpack.c.h.b16 %v347
    %v911 = vunpack.c.l.b16 %v348
    %v912 = vunpack.c.h.b16 %v348
    %v913 = vunpack.c.l.b16 %v349
    %v914 = vunpack.c.h.b16 %v349
    %v915 = vunpack.c.l.b16 %v350
    %v916 = vunpack.c.h.b16 %v350
    %v917 = vunpack.c.l.b16 %v351
    %v918 = vunpack.c.h.b16 %v351
    %v919 = vunpack.c.l.b16 %v352
    %v920 = vunpack.c.h.b16 %v352
    %v921 = vunpack.c.l.b16 %v353
    %v922 = vunpack.c.h.b16 %v353
    %v923 = vunpack.c.l.b16 %v354
    %v924 = vunpack.c.h.b16 %v354
    %v925 = vunpack.c.l.b16 %v355
    %v926 = vunpack.c.h.b16 %v355
    %v927 = vunpack.c.l.b16 %v356
    %v928 = vunpack.c.h.b16 %v356
    %v929 = vunpack.c.l.b16 %v357
    %v930 = vunpack.c.h.b16 %v357
    %v931 = vunpack.c.l.b16 %v358
    %v932 = vunpack.c.h.b16 %v358
    %v933 = vunpack.c.l.b16 %v359
    %v934 = vunpack.c.h.b16 %v359
    %v935 = vunpack.c.l.b16 %v360
    %v936 = vunpack.c.h.b16 %v360
    %v937 = vunpack.c.l.b16 %v361
    %v938 = vunpack.c.h.b16 %v361
    %v939 = vunpack.c.l.b16 %v362
    %v940 = vunpack.c.h.b16 %v362
    %v941 = vunpack.c.l.b16 %v363
    %v942 = vunpack.c.h.b16 %v363
    %v943 = vunpack.c.l.b16 %v364
    %v944 = vunpack.c.h.b16 %v364
    %v945 = vunpack.c.l.b16 %v365
    %v946 = vunpack.c.h.b16 %v365
    %v947 = vunpack.c.l.b16 %v366
    %v948 = vunpack.c.h.b16 %v366
    %v949 = vunpack.c.l.b16 %v367
    %v950 = vunpack.c.h.b16 %v367
    %v951 = vunpack.c.l.b16 %v368
    %v952 = vunpack.c.h.b16 %v368
    %v953 = vunpack.c.l.b16 %v369
    %v954 = vunpack.c.h.b16 %v369
    %v955 = vunpack.c.l.b16 %v370
    %v956 = vunpack.c.h.b16 %v370
    %v957 = vunpack.c.l.b16 %v371
    %v958 = vunpack.c.h.b16 %v371
    %v959 = vunpack.c.l.b16 %v372
    %v960 = vunpack.c.h.b16 %v372
    %v961 = vpack.c.b16 %v573, %v569
    %v962 = vpack.c.b16 %v574, %v570
    %v963 = vpack.c.b16 %v575, %v571
    %v964 = vpack.c.b16 %v576, %v572
    %v965 = vpack.c.b16 %v581, %v577
    %v966 = vpack.c.b16 %v582, %v578
    %v967 = vpack.c.b16 %v583, %v579
    %v968 = vpack.c.b16 %v584, %v580
    %v969 = vpack.c.b16 %v589, %v585
    %v970 = vpack.c.b16 %v590, %v586
    %v971 = vpack.c.b16 %v591, %v587
    %v972 = vpack.c.b16 %v592, %v588
    %v973 = vpack.c.b16 %v597, %v593
    %v974 = vpack.c.b16 %v598, %v594
    %v975 = vpack.c.b16 %v599, %v595
    %v976 = vpack.c.b16 %v600, %v596
    %v977 = vpack.c.b16 %v605, %v601
    %v978 = vpack.c.b16 %v606, %v602
    %v979 = vpack.c.b16 %v607, %v603
    %v980 = vpack.c.b16 %v608, %v604
    %v981 = vpack.c.b16 %v613, %v609
    %v982 = vpack.c.b16 %v614, %v610
    %v983 = vpack.c.b16 %v615, %v611
    %v984 = vpack.c.b16 %v616, %v612
    %v985 = vpack.c.b16 %v621, %v617
    %v986 = vpack.c.b16 %v622, %v618
    %v987 = vpack.c.b16 %v623, %v619
    %v988 = vpack.c.b16 %v624, %v620
    %v989 = vpack.c.b16 %v629, %v625
    %v990 = vpack.c.b16 %v630, %v626
    %v991 = vpack.c.b16 %v631, %v627
    %v992 = vpack.c.b16 %v632, %v628
    %v993 = vpack.c.b16 %v637, %v633
    %v994 = vpack.c.b16 %v638, %v634
    %v995 = vpack.c.b16 %v639, %v635
    %v996 = vpack.c.b16 %v640, %v636
    %v997 = vpack.c.b16 %v645, %v641
    %v998 = vpack.c.b16 %v646, %v642
    %v999 = vpack.c.b16 %v647, %v643
    %v1000 = vpack.c.b16 %v648, %v644
    %v1001 = vpack.c.b16 %v653, %v649
    %v1002 = vpack.c.b16 %v654, %v650
    %v1003 = vpack.c.b16 %v655, %v651
    %v1004 = vpack.c.b16 %v656, %v652
    %v1005 = vpack.c.b16 %v661, %v657
    %v1006 = vpack.c.b16 %v662, %v658
    %v1007 = vpack.c.b16 %v663, %v659
    %v1008 = vpack.c.b16 %v664, %v660
    %v1009 = vpack.c.b16 %v669, %v665
    %v1010 = vpack.c.b16 %v670, %v666
    %v1011 = vpack.c.b16 %v671, %v667
    %v1012 = vpack.c.b16 %v672, %v668
    %v1013 = vpack.c.b16 %v677, %v673
    %v1014 = vpack.c.b16 %v678, %v674
    %v1015 = vpack.c.b16 %v679, %v675
    %v1016 = vpack.c.b16 %v680, %v676
    %v1017 = vpack.c.b16 %v685, %v681
    %v1018 = vpack.c.b16 %v686, %v682
    %v1019 = vpack.c.b16 %v687, %v683
    %v1020 = vpack.c.b16 %v688, %v684
    %v1021 = vpack.c.b16 %v693, %v689
    %v1022 = vpack.c.b16 %v694, %v690
    %v1023 = vpack.c.b16 %v695, %v691
    %v1024 = vpack.c.b16 %v696, %v692
    %v1025 = vpack.c.b16 %v701, %v697
    %v1026 = vpack.c.b16 %v702, %v698
    %v1027 = vpack.c.b16 %v703, %v699
    %v1028 = vpack.c.b16 %v704, %v700
    %v1029 = vpack.c.b16 %v709, %v705
    %v1030 = vpack.c.b16 %v710, %v706
    %v1031 = vpack.c.b16 %v711, %v707
    %v1032 = vpack.c.b16 %v712, %v708
    %v1033 = vpack.c.b16 %v717, %v713
    %v1034 = vpack.c.b16 %v718, %v714
    %v1035 = vpack.c.b16 %v719, %v715
    %v1036 = vpack.c.b16 %v720, %v716
    %v1037 = vpack.c.b16 %v725, %v721
    %v1038 = vpack.c.b16 %v726, %v722
    %v1039 = vpack.c.b16 %v727, %v723
    %v1040 = vpack.c.b16 %v728, %v724
    %v1041 = vpack.c.b16 %v733, %v729
    %v1042 = vpack.c.b16 %v734, %v730
    %v1043 = vpack.c.b16 %v735, %v731
    %v1044 = vpack.c.b16 %v736, %v732
    %v1045 = vpack.c.b16 %v741, %v737
    %v1046 = vpack.c.b16 %v742, %v738
    %v1047 = vpack.c.b16 %v743, %v739
    %v1048 = vpack.c.b16 %v744, %v740
    %v1049 = vpack.c.b16 %v749, %v745
    %v1050 = vpack.c.b16 %v750, %v746
    %v1051 = vpack.c.b16 %v751, %v747
    %v1052 = vpack.c.b16 %v752, %v748
    %v1053 = vpack.c.b16 %v757, %v753
    %v1054 = vpack.c.b16 %v758, %v754
    %v1055 = vpack.c.b16 %v759, %v755
    %v1056 = vpack.c.b16 %v760, %v756
    %v1057 = vpack.c.b16 %v765, %v761
    %v1058 = vpack.c.b16 %v766, %v762
    %v1059 = vpack.c.b16 %v767, %v763
    %v1060 = vpack.c.b16 %v768, %v764
    %v1061 = vpack.c.b16 %v773, %v769
    %v1062 = vpack.c.b16 %v774, %v770
    %v1063 = vpack.c.b16 %v775, %v771
    %v1064 = vpack.c.b16 %v776, %v772
    %v1065 = vpack.c.b16 %v781, %v777
    %v1066 = vpack.c.b16 %v782, %v778
    %v1067 = vpack.c.b16 %v783, %v779
    %v1068 = vpack.c.b16 %v784, %v780
    %v1069 = vpack.c.b16 %v789, %v785
    %v1070 = vpack.c.b16 %v790, %v786
    %v1071 = vpack.c.b16 %v791, %v787
    %v1072 = vpack.c.b16 %v792, %v788
    %v1073 = vpack.c.b16 %v797, %v793
    %v1074 = vpack.c.b16 %v798, %v794
    %v1075 = vpack.c.b16 %v799, %v795
    %v1076 = vpack.c.b16 %v800, %v796
    %v1077 = vpack.c.b16 %v805, %v801
    %v1078 = vpack.c.b16 %v806, %v802
    %v1079 = vpack.c.b16 %v807, %v803
    %v1080 = vpack.c.b16 %v808, %v804
    %v1081 = vpack.c.b16 %v813, %v809
    %v1082 = vpack.c.b16 %v814, %v810
    %v1083 = vpack.c.b16 %v815, %v811
    %v1084 = vpack.c.b16 %v816, %v812
    %v1085 = vpack.c.b16 %v821, %v817
    %v1086 = vpack.c.b16 %v822, %v818
    %v1087 = vpack.c.b16 %v823, %v819
    %v1088 = vpack.c.b16 %v824, %v820
    %v1089 = vpack.c.b16 %v829, %v825
    %v1090 = vpack.c.b16 %v830, %v826
    %v1091 = vpack.c.b16 %v831, %v827
    %v1092 = vpack.c.b16 %v832, %v828
    %v1093 = vpack.c.b16 %v837, %v833
    %v1094 = vpack.c.b16 %v838, %v834
    %v1095 = vpack.c.b16 %v839, %v835
    %v1096 = vpack.c.b16 %v840, %v836
    %v1097 = vpack.c.b16 %v845, %v841
    %v1098 = vpack.c.b16 %v846, %v842
    %v1099 = vpack.c.b16 %v847, %v843
    %v1100 = vpack.c.b16 %v848, %v844
    %v1101 = vpack.c.b16 %v853, %v849
    %v1102 = vpack.c.b16 %v854, %v850
    %v1103 = vpack.c.b16 %v855, %v851
    %v1104 = vpack.c.b16 %v856, %v852
    %v1105 = vpack.c.b16 %v861, %v857
    %v1106 = vpack.c.b16 %v862, %v858
    %v1107 = vpack.c.b16 %v863, %v859
    %v1108 = vpack.c.b16 %v864, %v860
    %v1109 = vpack.c.b16 %v869, %v865
    %v1110 = vpack.c.b16 %v870, %v866
    %v1111 = vpack.c.b16 %v871, %v867
    %v1112 = vpack.c.b16 %v872, %v868
    %v1113 = vpack.c.b16 %v877, %v873
    %v1114 = vpack.c.b16 %v878, %v874
    %v1115 = vpack.c.b16 %v879, %v875
    %v1116 = vpack.c.b16 %v880, %v876
    %v1117 = vpack.c.b16 %v885, %v881
    %v1118 = vpack.c.b16 %v886, %v882
    %v1119 = vpack.c.b16 %v887, %v883
    %v1120 = vpack.c.b16 %v888, %v884
    %v1121 = vpack.c.b16 %v893, %v889
    %v1122 = vpack.c.b16 %v894, %v890
    %v1123 = vpack.c.b16 %v895, %v891
    %v1124 = vpack.c.b16 %v896, %v892
    %v1125 = vpack.c.b16 %v901, %v897
    %v1126 = vpack.c.b16 %v902, %v898
    %v1127 = vpack.c.b16 %v903, %v899
    %v1128 = vpack.c.b16 %v904, %v900
    %v1129 = vpack.c.b16 %v909, %v905
    %v1130 = vpack.c.b16 %v910, %v906
    %v1131 = vpack.c.b16 %v911, %v907
    %v1132 = vpack.c.b16 %v912, %v908
    %v1133 = vpack.c.b16 %v917, %v913
    %v1134 = vpack.c.b16 %v918, %v914
    %v1135 = vpack.c.b16 %v919, %v915
    %v1136 = vpack.c.b16 %v920, %v916
    %v1137 = vpack.c.b16 %v925, %v921
    %v1138 = vpack.c.b16 %v926, %v922
    %v1139 = vpack.c.b16 %v927, %v923
    %v1140 = vpack.c.b16 %v928, %v924
    %v1141 = vpack.c.b16 %v933, %v929
    %v1142 = vpack.c.b16 %v934, %v930
    %v1143 = vpack.c.b16 %v935, %v931
    %v1144 = vpack.c.b16 %v936, %v932
    %v1145 = vpack.c.b16 %v941, %v937
    %v1146 = vpack.c.b16 %v942, %v938
    %v1147 = vpack.c.b16 %v943, %v939
    %v1148 = vpack.c.b16 %v944, %v940
    %v1149 = vpack.c.b16 %v949, %v945
    %v1150 = vpack.c.b16 %v950, %v946
    %v1151 = vpack.c.b16 %v951, %v947
    %v1152 = vpack.c.b16 %v952, %v948
    %v1153 = vpack.c.b16 %v957, %v953
    %v1154 = vpack.c.b16 %v958, %v954
    %v1155 = vpack.c.b16 %v959, %v955
    %v1156 = vpack.c.b16 %v960, %v956
    %vm1353 = vcmask 130048
    %v1355 = vsel %vm1353, %v78, 0
    %1357 = vmatprep.subr.bf16.mxu0 %v990
    %1358 = vmatpush1.bf16.msra.mxu0 %v989
    %1359 = vmatprep.subr.bf16.mxu0 %v986
    %1360 = vmatpush1.bf16.msra.mxu0 %v985
    %1361 = vmatprep.subr.bf16.mxu0 %v982
    %1362 = vmatpush1.bf16.msra.mxu0 %v981
    %1363 = vmatprep.subr.bf16.mxu0 %v978
    %1364 = vmatpush1.bf16.msra.mxu0 %v977
    %1365 = vmatprep.subr.bf16.mxu0 %v974
    %1366 = vmatpush1.bf16.msra.mxu0 %v973
    %1367 = vmatprep.subr.bf16.mxu0 %v970
    %1368 = vmatpush1.bf16.msra.mxu0 %v969
    %1369 = vmatprep.subr.bf16.mxu0 %v966
    %1370 = vmatpush1.bf16.msra.mxu0 %v965
    %1371 = vmatprep.subr.bf16.mxu0 %v962
    %1372 = vmatpush1.bf16.msra.mxu0 %v961
    %1373 = vmatprep.subr.bf16.mxu0 %v1022
    %1374 = vmatpush2.bf16.msra.mxu0 %v1021
    %1375 = vmatprep.subr.bf16.mxu0 %v1018
    %1376 = vmatpush2.bf16.msra.mxu0 %v1017
    %1377 = vmatprep.subr.bf16.mxu0 %v1014
    %1378 = vmatpush2.bf16.msra.mxu0 %v1013
    %1379 = vmatprep.subr.bf16.mxu0 %v1010
    %1380 = vmatpush2.bf16.msra.mxu0 %v1009
    %1381 = vmatprep.subr.bf16.mxu0 %v1006
    %1382 = vmatpush2.bf16.msra.mxu0 %v1005
    %1383 = vmatprep.subr.bf16.mxu0 %v1002
    %1384 = vmatpush2.bf16.msra.mxu0 %v1001
    %1385 = vmatprep.subr.bf16.mxu0 %v998
    %1386 = vmatpush2.bf16.msra.mxu0 %v997
    %1387 = vmatprep.subr.bf16.mxu0 %v994
    %1388 = vmatpush2.bf16.msra.mxu0 %v993
    %1389 = vmatprep.mubr.bf16.mxu0 %v73
    %1390 = vmatmul.mubr.bf16.gmra.mxu0 %v72
    %v1391 = vpop.f32.mrf.mxu0
    %v1392 = vadd.f32 0.0, %v1391
    %v1393 = vpop.f32.mrf.mxu0
    %v1394 = vadd.f32 0.0, %v1393
    %v1395 = vpop.f32.mrf.mxu0
    %v1396 = vpop.f32.mrf.mxu0
    %1397 = vdwg.mxu0
    %1398 = vmatprep.subr.bf16.mxu0 %v1054
    %1399 = vmatpush1.bf16.msra.mxu0 %v1053
    %1400 = vmatprep.subr.bf16.mxu0 %v1050
    %1401 = vmatpush1.bf16.msra.mxu0 %v1049
    %1402 = vmatprep.subr.bf16.mxu0 %v1046
    %1403 = vmatpush1.bf16.msra.mxu0 %v1045
    %1404 = vmatprep.subr.bf16.mxu0 %v1042
    %1405 = vmatpush1.bf16.msra.mxu0 %v1041
    %1406 = vmatprep.subr.bf16.mxu0 %v1038
    %1407 = vmatpush1.bf16.msra.mxu0 %v1037
    %1408 = vmatprep.subr.bf16.mxu0 %v1034
    %1409 = vmatpush1.bf16.msra.mxu0 %v1033
    %1410 = vmatprep.subr.bf16.mxu0 %v1030
    %1411 = vmatpush1.bf16.msra.mxu0 %v1029
    %1412 = vmatprep.subr.bf16.mxu0 %v1026
    %1413 = vmatpush1.bf16.msra.mxu0 %v1025
    %1414 = vmatprep.subr.bf16.mxu0 %v1086
    %1415 = vmatpush2.bf16.msra.mxu0 %v1085
    %1416 = vmatprep.subr.bf16.mxu0 %v1082
    %1417 = vmatpush2.bf16.msra.mxu0 %v1081
    %1418 = vmatprep.subr.bf16.mxu0 %v1078
    %1419 = vmatpush2.bf16.msra.mxu0 %v1077
    %1420 = vmatprep.subr.bf16.mxu0 %v1074
    %1421 = vmatpush2.bf16.msra.mxu0 %v1073
    %1422 = vmatprep.subr.bf16.mxu0 %v1070
    %1423 = vmatpush2.bf16.msra.mxu0 %v1069
    %1424 = vmatprep.subr.bf16.mxu0 %v1066
    %1425 = vmatpush2.bf16.msra.mxu0 %v1065
    %1426 = vmatprep.subr.bf16.mxu0 %v1062
    %1427 = vmatpush2.bf16.msra.mxu0 %v1061
    %1428 = vmatprep.subr.bf16.mxu0 %v1058
    %1429 = vmatpush2.bf16.msra.mxu0 %v1057
    %1430 = vmatprep.mubr.bf16.mxu0 %v75
    %1431 = vmatmul.mubr.bf16.gmra.mxu0 %v74
    %v1432 = vpop.f32.mrf.mxu0
    %v1433 = vadd.f32 %v1392, %v1432
    %v1434 = vpop.f32.mrf.mxu0
    %v1435 = vadd.f32 %v1394, %v1434
    %v1436 = vpop.f32.mrf.mxu0
    %v1437 = vpop.f32.mrf.mxu0
    %1438 = vdwg.mxu0
    %1439 = vmatprep.subr.bf16.mxu0 %v1118
    %1440 = vmatpush1.bf16.msra.mxu0 %v1117
    %1441 = vmatprep.subr.bf16.mxu0 %v1114
    %1442 = vmatpush1.bf16.msra.mxu0 %v1113
    %1443 = vmatprep.subr.bf16.mxu0 %v1110
    %1444 = vmatpush1.bf16.msra.mxu0 %v1109
    %1445 = vmatprep.subr.bf16.mxu0 %v1106
    %1446 = vmatpush1.bf16.msra.mxu0 %v1105
    %1447 = vmatprep.subr.bf16.mxu0 %v1102
    %1448 = vmatpush1.bf16.msra.mxu0 %v1101
    %1449 = vmatprep.subr.bf16.mxu0 %v1098
    %1450 = vmatpush1.bf16.msra.mxu0 %v1097
    %1451 = vmatprep.subr.bf16.mxu0 %v1094
    %1452 = vmatpush1.bf16.msra.mxu0 %v1093
    %1453 = vmatprep.subr.bf16.mxu0 %v1090
    %1454 = vmatpush1.bf16.msra.mxu0 %v1089
    %1455 = vmatprep.subr.bf16.mxu0 %v1150
    %1456 = vmatpush2.bf16.msra.mxu0 %v1149
    %1457 = vmatprep.subr.bf16.mxu0 %v1146
    %1458 = vmatpush2.bf16.msra.mxu0 %v1145
    %1459 = vmatprep.subr.bf16.mxu0 %v1142
    %1460 = vmatpush2.bf16.msra.mxu0 %v1141
    %1461 = vmatprep.subr.bf16.mxu0 %v1138
    %1462 = vmatpush2.bf16.msra.mxu0 %v1137
    %1463 = vmatprep.subr.bf16.mxu0 %v1134
    %1464 = vmatpush2.bf16.msra.mxu0 %v1133
    %1465 = vmatprep.subr.bf16.mxu0 %v1130
    %1466 = vmatpush2.bf16.msra.mxu0 %v1129
    %1467 = vmatprep.subr.bf16.mxu0 %v1126
    %1468 = vmatpush2.bf16.msra.mxu0 %v1125
    %1469 = vmatprep.subr.bf16.mxu0 %v1122
    %1470 = vmatpush2.bf16.msra.mxu0 %v1121
    %1471 = vmatprep.mubr.bf16.mxu0 %v77
    %1472 = vmatmul.mubr.bf16.gmra.mxu0 %v76
    %v1473 = vpop.f32.mrf.mxu0
    %v1474 = vadd.f32 %v1433, %v1473
    %v1475 = vpop.f32.mrf.mxu0
    %v1476 = vadd.f32 %v1435, %v1475
    %v1477 = vpop.f32.mrf.mxu0
    %v1478 = vpop.f32.mrf.mxu0
    %1479 = vdwg.mxu0
    %1480 = vmatprep.subr.bf16.mxu0 0
    %1481 = vmatpush1.bf16.msra.mxu0 0
    %1482 = vmatprep.subr.bf16.mxu0 0
    %1483 = vmatpush1.bf16.msra.mxu0 0
    %1484 = vmatprep.subr.bf16.mxu0 0
    %1485 = vmatpush1.bf16.msra.mxu0 0
    %1486 = vmatprep.subr.bf16.mxu0 0
    %1487 = vmatpush1.bf16.msra.mxu0 0
    %1488 = vmatprep.subr.bf16.mxu0 0
    %1489 = vmatpush1.bf16.msra.mxu0 0
    %1490 = vmatprep.subr.bf16.mxu0 0
    %1491 = vmatpush1.bf16.msra.mxu0 0
    %1492 = vmatprep.subr.bf16.mxu0 0
    %1493 = vmatpush1.bf16.msra.mxu0 0
    %1494 = vmatprep.subr.bf16.mxu0 %v1154
    %1495 = vmatpush1.bf16.msra.mxu0 %v1153
    %1496 = vmatprep.subr.bf16.mxu0 0
    %1497 = vmatpush2.bf16.msra.mxu0 0
    %1498 = vmatprep.subr.bf16.mxu0 0
    %1499 = vmatpush2.bf16.msra.mxu0 0
    %1500 = vmatprep.subr.bf16.mxu0 0
    %1501 = vmatpush2.bf16.msra.mxu0 0
    %1502 = vmatprep.subr.bf16.mxu0 0
    %1503 = vmatpush2.bf16.msra.mxu0 0
    %1504 = vmatprep.subr.bf16.mxu0 0
    %1505 = vmatpush2.bf16.msra.mxu0 0
    %1506 = vmatprep.subr.bf16.mxu0 0
    %1507 = vmatpush2.bf16.msra.mxu0 0
    %1508 = vmatprep.subr.bf16.mxu0 0
    %1509 = vmatpush2.bf16.msra.mxu0 0
    %1510 = vmatprep.subr.bf16.mxu0 0
    %1511 = vmatpush2.bf16.msra.mxu0 0
    %1512 = vmatprep.mubr.bf16.mxu0 0
    %1513 = vmatmul.mubr.bf16.gmra.mxu0 %v1355
    %v1514 = vpop.f32.mrf.mxu0
    %v1515 = vadd.f32 %v1474, %v1514
    %v1516 = vpop.f32.mrf.mxu0
    %v1517 = vadd.f32 %v1476, %v1516
    %v1518 = vpop.f32.mrf.mxu0
    %v1519 = vpop.f32.mrf.mxu0
    %1520 = vdwg.mxu0
    %1521 = vmatprep.subr.bf16.mxu0 %v992
    %1522 = vmatpush1.bf16.msra.mxu0 %v991
    %1523 = vmatprep.subr.bf16.mxu0 %v988
    %1524 = vmatpush1.bf16.msra.mxu0 %v987
    %1525 = vmatprep.subr.bf16.mxu0 %v984
    %1526 = vmatpush1.bf16.msra.mxu0 %v983
    %1527 = vmatprep.subr.bf16.mxu0 %v980
    %1528 = vmatpush1.bf16.msra.mxu0 %v979
    %1529 = vmatprep.subr.bf16.mxu0 %v976
    %1530 = vmatpush1.bf16.msra.mxu0 %v975
    %1531 = vmatprep.subr.bf16.mxu0 %v972
    %1532 = vmatpush1.bf16.msra.mxu0 %v971
    %1533 = vmatprep.subr.bf16.mxu0 %v968
    %1534 = vmatpush1.bf16.msra.mxu0 %v967
    %1535 = vmatprep.subr.bf16.mxu0 %v964
    %1536 = vmatpush1.bf16.msra.mxu0 %v963
    %1537 = vmatprep.subr.bf16.mxu0 %v1024
    %1538 = vmatpush2.bf16.msra.mxu0 %v1023
    %1539 = vmatprep.subr.bf16.mxu0 %v1020
    %1540 = vmatpush2.bf16.msra.mxu0 %v1019
    %1541 = vmatprep.subr.bf16.mxu0 %v1016
    %1542 = vmatpush2.bf16.msra.mxu0 %v1015
    %1543 = vmatprep.subr.bf16.mxu0 %v1012
    %1544 = vmatpush2.bf16.msra.mxu0 %v1011
    %1545 = vmatprep.subr.bf16.mxu0 %v1008
    %1546 = vmatpush2.bf16.msra.mxu0 %v1007
    %1547 = vmatprep.subr.bf16.mxu0 %v1004
    %1548 = vmatpush2.bf16.msra.mxu0 %v1003
    %1549 = vmatprep.subr.bf16.mxu0 %v1000
    %1550 = vmatpush2.bf16.msra.mxu0 %v999
    %1551 = vmatprep.subr.bf16.mxu0 %v996
    %1552 = vmatpush2.bf16.msra.mxu0 %v995
    %1553 = vmatprep.mubr.bf16.mxu0 %v73
    %1554 = vmatmul.mubr.bf16.gmra.mxu0 %v72
    %v1555 = vpop.f32.mrf.mxu0
    %v1556 = vadd.f32 0.0, %v1555
    %v1557 = vpop.f32.mrf.mxu0
    %v1558 = vadd.f32 0.0, %v1557
    %v1559 = vpop.f32.mrf.mxu0
    %v1560 = vpop.f32.mrf.mxu0
    %1561 = vdwg.mxu0
    %1562 = vmatprep.subr.bf16.mxu0 %v1056
    %1563 = vmatpush1.bf16.msra.mxu0 %v1055
    %1564 = vmatprep.subr.bf16.mxu0 %v1052
    %1565 = vmatpush1.bf16.msra.mxu0 %v1051
    %1566 = vmatprep.subr.bf16.mxu0 %v1048
    %1567 = vmatpush1.bf16.msra.mxu0 %v1047
    %1568 = vmatprep.subr.bf16.mxu0 %v1044
    %1569 = vmatpush1.bf16.msra.mxu0 %v1043
    %1570 = vmatprep.subr.bf16.mxu0 %v1040
    %1571 = vmatpush1.bf16.msra.mxu0 %v1039
    %1572 = vmatprep.subr.bf16.mxu0 %v1036
    %1573 = vmatpush1.bf16.msra.mxu0 %v1035
    %1574 = vmatprep.subr.bf16.mxu0 %v1032
    %1575 = vmatpush1.bf16.msra.mxu0 %v1031
    %1576 = vmatprep.subr.bf16.mxu0 %v1028
    %1577 = vmatpush1.bf16.msra.mxu0 %v1027
    %1578 = vmatprep.subr.bf16.mxu0 %v1088
    %1579 = vmatpush2.bf16.msra.mxu0 %v1087
    %1580 = vmatprep.subr.bf16.mxu0 %v1084
    %1581 = vmatpush2.bf16.msra.mxu0 %v1083
    %1582 = vmatprep.subr.bf16.mxu0 %v1080
    %1583 = vmatpush2.bf16.msra.mxu0 %v1079
    %1584 = vmatprep.subr.bf16.mxu0 %v1076
    %1585 = vmatpush2.bf16.msra.mxu0 %v1075
    %1586 = vmatprep.subr.bf16.mxu0 %v1072
    %1587 = vmatpush2.bf16.msra.mxu0 %v1071
    %1588 = vmatprep.subr.bf16.mxu0 %v1068
    %1589 = vmatpush2.bf16.msra.mxu0 %v1067
    %1590 = vmatprep.subr.bf16.mxu0 %v1064
    %1591 = vmatpush2.bf16.msra.mxu0 %v1063
    %1592 = vmatprep.subr.bf16.mxu0 %v1060
    %1593 = vmatpush2.bf16.msra.mxu0 %v1059
    %1594 = vmatprep.mubr.bf16.mxu0 %v75
    %1595 = vmatmul.mubr.bf16.gmra.mxu0 %v74
    %v1596 = vpop.f32.mrf.mxu0
    %v1597 = vadd.f32 %v1556, %v1596
    %v1598 = vpop.f32.mrf.mxu0
    %v1599 = vadd.f32 %v1558, %v1598
    %v1600 = vpop.f32.mrf.mxu0
    %v1601 = vpop.f32.mrf.mxu0
    %1602 = vdwg.mxu0
    %1603 = vmatprep.subr.bf16.mxu0 %v1120
    %1604 = vmatpush1.bf16.msra.mxu0 %v1119
    %1605 = vmatprep.subr.bf16.mxu0 %v1116
    %1606 = vmatpush1.bf16.msra.mxu0 %v1115
    %1607 = vmatprep.subr.bf16.mxu0 %v1112
    %1608 = vmatpush1.bf16.msra.mxu0 %v1111
    %1609 = vmatprep.subr.bf16.mxu0 %v1108
    %1610 = vmatpush1.bf16.msra.mxu0 %v1107
    %1611 = vmatprep.subr.bf16.mxu0 %v1104
    %1612 = vmatpush1.bf16.msra.mxu0 %v1103
    %1613 = vmatprep.subr.bf16.mxu0 %v1100
    %1614 = vmatpush1.bf16.msra.mxu0 %v1099
    %1615 = vmatprep.subr.bf16.mxu0 %v1096
    %1616 = vmatpush1.bf16.msra.mxu0 %v1095
    %1617 = vmatprep.subr.bf16.mxu0 %v1092
    %1618 = vmatpush1.bf16.msra.mxu0 %v1091
    %1619 = vmatprep.subr.bf16.mxu0 %v1152
    %1620 = vmatpush2.bf16.msra.mxu0 %v1151
    %1621 = vmatprep.subr.bf16.mxu0 %v1148
    %1622 = vmatpush2.bf16.msra.mxu0 %v1147
    %1623 = vmatprep.subr.bf16.mxu0 %v1144
    %1624 = vmatpush2.bf16.msra.mxu0 %v1143
    %1625 = vmatprep.subr.bf16.mxu0 %v1140
    %1626 = vmatpush2.bf16.msra.mxu0 %v1139
    %1627 = vmatprep.subr.bf16.mxu0 %v1136
    %1628 = vmatpush2.bf16.msra.mxu0 %v1135
    %1629 = vmatprep.subr.bf16.mxu0 %v1132
    %1630 = vmatpush2.bf16.msra.mxu0 %v1131
    %1631 = vmatprep.subr.bf16.mxu0 %v1128
    %1632 = vmatpush2.bf16.msra.mxu0 %v1127
    %1633 = vmatprep.subr.bf16.mxu0 %v1124
    %1634 = vmatpush2.bf16.msra.mxu0 %v1123
    %1635 = vmatprep.mubr.bf16.mxu0 %v77
    %1636 = vmatmul.mubr.bf16.gmra.mxu0 %v76
    %v1637 = vpop.f32.mrf.mxu0
    %v1638 = vadd.f32 %v1597, %v1637
    %v1639 = vpop.f32.mrf.mxu0
    %v1640 = vadd.f32 %v1599, %v1639
    %v1641 = vpop.f32.mrf.mxu0
    %v1642 = vpop.f32.mrf.mxu0
    %1643 = vdwg.mxu0
    %1644 = vmatprep.subr.bf16.mxu0 0
    %1645 = vmatpush1.bf16.msra.mxu0 0
    %1646 = vmatprep.subr.bf16.mxu0 0
    %1647 = vmatpush1.bf16.msra.mxu0 0
    %1648 = vmatprep.subr.bf16.mxu0 0
    %1649 = vmatpush1.bf16.msra.mxu0 0
    %1650 = vmatprep.subr.bf16.mxu0 0
    %1651 = vmatpush1.bf16.msra.mxu0 0
    %1652 = vmatprep.subr.bf16.mxu0 0
    %1653 = vmatpush1.bf16.msra.mxu0 0
    %1654 = vmatprep.subr.bf16.mxu0 0
    %1655 = vmatpush1.bf16.msra.mxu0 0
    %1656 = vmatprep.subr.bf16.mxu0 0
    %1657 = vmatpush1.bf16.msra.mxu0 0
    %1658 = vmatprep.subr.bf16.mxu0 %v1156
    %1659 = vmatpush1.bf16.msra.mxu0 %v1155
    %1660 = vmatprep.subr.bf16.mxu0 0
    %1661 = vmatpush2.bf16.msra.mxu0 0
    %1662 = vmatprep.subr.bf16.mxu0 0
    %1663 = vmatpush2.bf16.msra.mxu0 0
    %1664 = vmatprep.subr.bf16.mxu0 0
    %1665 = vmatpush2.bf16.msra.mxu0 0
    %1666 = vmatprep.subr.bf16.mxu0 0
    %1667 = vmatpush2.bf16.msra.mxu0 0
    %1668 = vmatprep.subr.bf16.mxu0 0
    %1669 = vmatpush2.bf16.msra.mxu0 0
    %1670 = vmatprep.subr.bf16.mxu0 0
    %1671 = vmatpush2.bf16.msra.mxu0 0
    %1672 = vmatprep.subr.bf16.mxu0 0
    %1673 = vmatpush2.bf16.msra.mxu0 0
    %1674 = vmatprep.subr.bf16.mxu0 0
    %1675 = vmatpush2.bf16.msra.mxu0 0
    %1676 = vmatprep.mubr.bf16.mxu0 0
    %1677 = vmatmul.mubr.bf16.gmra.mxu0 %v1355
    %v1678 = vpop.f32.mrf.mxu0
    %v1679 = vadd.f32 %v1638, %v1678
    %v1680 = vpop.f32.mrf.mxu0
    %v1681 = vadd.f32 %v1640, %v1680
    %v1682 = vpop.f32.mrf.mxu0
    %v1683 = vpop.f32.mrf.mxu0
    %1684 = vdwg.mxu0
    %v1685 = vld [vmem:[%s2] sm:$0xf]
    %v1687 = vlaneseq
    %v1688 = vshrl.u32 %v1687, 7
    %v1689 = vsub.s32 0, %v1688
    %v1690 = vrot.slane %v1685, %v1689
    %v1691 = vlaneseq
    %v1692 = vshrl.u32 %v1691, 7
    %v1693 = vsub.s32 1, %v1692
    %v1694 = vrot.slane %v1685, %v1693
    %v1695 = vlaneseq
    %v1696 = vshrl.u32 %v1695, 7
    %v1697 = vsub.s32 2, %v1696
    %v1698 = vrot.slane %v1685, %v1697
    %v1699 = vlaneseq
    %v1700 = vshrl.u32 %v1699, 7
    %v1701 = vsub.s32 3, %v1700
    %v1702 = vrot.slane %v1685, %v1701
    %v1707 = vmul.f32 %v1515, %v1690
    %v1708 = vmul.f32 %v1517, %v1694
    %v1709 = vmul.f32 %v1679, %v1698
    %v1710 = vmul.f32 %v1681, %v1702
    %v1711 = vld [vmem:[%s3] sm:$0xf]
    %v1713 = vlaneseq
    %v1714 = vshrl.u32 %v1713, 7
    %v1715 = vsub.s32 0, %v1714
    %v1716 = vrot.slane %v1711, %v1715
    %v1717 = vlaneseq
    %v1718 = vshrl.u32 %v1717, 7
    %v1719 = vsub.s32 1, %v1718
    %v1720 = vrot.slane %v1711, %v1719
    %v1721 = vlaneseq
    %v1722 = vshrl.u32 %v1721, 7
    %v1723 = vsub.s32 2, %v1722
    %v1724 = vrot.slane %v1711, %v1723
    %v1725 = vlaneseq
    %v1726 = vshrl.u32 %v1725, 7
    %v1727 = vsub.s32 3, %v1726
    %v1728 = vrot.slane %v1711, %v1727
    %v1733 = vadd.f32 %v1707, %v1716
    %v1734 = vadd.f32 %v1708, %v1720
    %v1735 = vadd.f32 %v1709, %v1724
    %v1736 = vadd.f32 %v1710, %v1728
    %v1737 = vmax.f32 %v1733, 0.0
    %v1738 = vmax.f32 %v1734, 0.0
    %v1739 = vmax.f32 %v1735, 0.0
    %v1740 = vmax.f32 %v1736, 0.0
    %v1741 = vpack.c.bf16 %v1737, %v1737
    %v1742 = vpack.c.bf16 %v1738, %v1738
    %v1743 = vpack.c.bf16 %v1739, %v1739
    %v1744 = vpack.c.bf16 %v1740, %v1740
    %v1745 = vld [vmem:[#allocation2] sm:$0xff]
    %v1746 = vld [vmem:[#allocation2 + $0x8] sm:$0xff]
    %v1747 = vld [vmem:[#allocation2 + $0x10] sm:$0xff]
    %v1748 = vld [vmem:[#allocation2 + $0x18] sm:$0xff]
    %v1749 = vld [vmem:[#allocation2 + $0x20] sm:$0xff]
    %v1750 = vld [vmem:[#allocation2 + $0x28] sm:$0xff]
    %v1751 = vld [vmem:[#allocation2 + $0x30] sm:$0xff]
    %v1752 = vld [vmem:[#allocation2 + $0x38] sm:$0xff]
    %v1753 = vld [vmem:[#allocation2 + $0x40] sm:$0xff]
    %v1754 = vld [vmem:[#allocation2 + $0x48] sm:$0xff]
    %v1755 = vld [vmem:[#allocation2 + $0x50] sm:$0xff]
    %v1756 = vld [vmem:[#allocation2 + $0x58] sm:$0xff]
    %v1757 = vld [vmem:[#allocation2 + $0x60] sm:$0xff]
    %v1758 = vld [vmem:[#allocation2 + $0x68] sm:$0xff]
    %v1759 = vld [vmem:[#allocation2 + $0x70] sm:$0xff]
    %v1760 = vld [vmem:[#allocation2 + $0x78] sm:$0xff]
    %v1761 = vld [vmem:[#allocation2 + $0x80] sm:$0xff]
    %v1762 = vld [vmem:[#allocation2 + $0x88] sm:$0xff]
    %v1763 = vld [vmem:[#allocation2 + $0x90] sm:$0xff]
    %v1764 = vld [vmem:[#allocation2 + $0x98] sm:$0xff]
    %v1765 = vld [vmem:[#allocation2 + $0xa0] sm:$0xff]
    %v1766 = vld [vmem:[#allocation2 + $0xa8] sm:$0xff]
    %v1767 = vld [vmem:[#allocation2 + $0xb0] sm:$0xff]
    %v1768 = vld [vmem:[#allocation2 + $0xb8] sm:$0xff]
    %v1769 = vld [vmem:[#allocation2 + $0xc0] sm:$0xff]
    %v1770 = vld [vmem:[#allocation2 + $0xc8] sm:$0xff]
    %v1771 = vld [vmem:[#allocation2 + $0xd0] sm:$0xff]
    %v1772 = vld [vmem:[#allocation2 + $0xd8] sm:$0xff]
    %v1773 = vld [vmem:[#allocation2 + $0xe0] sm:$0xff]
    %v1774 = vld [vmem:[#allocation2 + $0xe8] sm:$0xff]
    %v1775 = vld [vmem:[#allocation2 + $0xf0] sm:$0xff]
    %v1776 = vld [vmem:[#allocation2 + $0xf8] sm:$0xff]
    %v1777 = vld [vmem:[#allocation2 + $0x100] sm:$0xff]
    %v1778 = vld [vmem:[#allocation2 + $0x108] sm:$0xff]
    %v1779 = vld [vmem:[#allocation2 + $0x110] sm:$0xff]
    %v1780 = vld [vmem:[#allocation2 + $0x118] sm:$0xff]
    %v1781 = vld [vmem:[#allocation2 + $0x120] sm:$0xff]
    %v1782 = vld [vmem:[#allocation2 + $0x128] sm:$0xff]
    %v1783 = vld [vmem:[#allocation2 + $0x130] sm:$0xff]
    %v1784 = vld [vmem:[#allocation2 + $0x138] sm:$0xff]
    %v1785 = vld [vmem:[#allocation2 + $0x140] sm:$0xff]
    %v1786 = vld [vmem:[#allocation2 + $0x148] sm:$0xff]
    %v1787 = vld [vmem:[#allocation2 + $0x150] sm:$0xff]
    %v1788 = vld [vmem:[#allocation2 + $0x158] sm:$0xff]
    %v1789 = vld [vmem:[#allocation2 + $0x160] sm:$0xff]
    %v1790 = vld [vmem:[#allocation2 + $0x168] sm:$0xff]
    %v1791 = vld [vmem:[#allocation2 + $0x170] sm:$0xff]
    %v1792 = vld [vmem:[#allocation2 + $0x178] sm:$0xff]
    %v1793 = vld [vmem:[#allocation2 + $0x180] sm:$0xff]
    %v1794 = vld [vmem:[#allocation2 + $0x188] sm:$0xff]
    %v1795 = vld [vmem:[#allocation2 + $0x190] sm:$0xff]
    %v1796 = vld [vmem:[#allocation2 + $0x198] sm:$0xff]
    %v1797 = vld [vmem:[#allocation2 + $0x1a0] sm:$0xff]
    %v1798 = vld [vmem:[#allocation2 + $0x1a8] sm:$0xff]
    %v1799 = vld [vmem:[#allocation2 + $0x1b0] sm:$0xff]
    %v1800 = vld [vmem:[#allocation2 + $0x1b8] sm:$0xff]
    %v1801 = vld [vmem:[#allocation2 + $0x1c0] sm:$0xff]
    %v1802 = vld [vmem:[#allocation2 + $0x1c8] sm:$0xff]
    %v1803 = vld [vmem:[#allocation2 + $0x1d0] sm:$0xff]
    %v1804 = vld [vmem:[#allocation2 + $0x1d8] sm:$0xff]
    %v1805 = vld [vmem:[#allocation2 + $0x1e0] sm:$0xff]
    %v1806 = vld [vmem:[#allocation2 + $0x1e8] sm:$0xff]
    %v1807 = vld [vmem:[#allocation2 + $0x1f0] sm:$0xff]
    %v1808 = vld [vmem:[#allocation2 + $0x1f8] sm:$0xff]
    %v1809 = vunpack.c.l.s8.bf16 %v1745
    %v1810 = vunpack.c.l.s8.bf16 %v1746
    %v1811 = vunpack.c.l.s8.bf16 %v1747
    %v1812 = vunpack.c.l.s8.bf16 %v1748
    %v1813 = vunpack.c.h.s8.bf16 %v1745
    %v1814 = vunpack.c.h.s8.bf16 %v1746
    %v1815 = vunpack.c.h.s8.bf16 %v1747
    %v1816 = vunpack.c.h.s8.bf16 %v1748
    %v1817 = vunpack.c.l.s8.bf16 %v1749
    %v1818 = vunpack.c.l.s8.bf16 %v1750
    %v1819 = vunpack.c.l.s8.bf16 %v1751
    %v1820 = vunpack.c.l.s8.bf16 %v1752
    %v1821 = vunpack.c.h.s8.bf16 %v1749
    %v1822 = vunpack.c.h.s8.bf16 %v1750
    %v1823 = vunpack.c.h.s8.bf16 %v1751
    %v1824 = vunpack.c.h.s8.bf16 %v1752
    %v1825 = vunpack.c.l.s8.bf16 %v1753
    %v1826 = vunpack.c.l.s8.bf16 %v1754
    %v1827 = vunpack.c.l.s8.bf16 %v1755
    %v1828 = vunpack.c.l.s8.bf16 %v1756
    %v1829 = vunpack.c.h.s8.bf16 %v1753
    %v1830 = vunpack.c.h.s8.bf16 %v1754
    %v1831 = vunpack.c.h.s8.bf16 %v1755
    %v1832 = vunpack.c.h.s8.bf16 %v1756
    %v1833 = vunpack.c.l.s8.bf16 %v1757
    %v1834 = vunpack.c.l.s8.bf16 %v1758
    %v1835 = vunpack.c.l.s8.bf16 %v1759
    %v1836 = vunpack.c.l.s8.bf16 %v1760
    %v1837 = vunpack.c.h.s8.bf16 %v1757
    %v1838 = vunpack.c.h.s8.bf16 %v1758
    %v1839 = vunpack.c.h.s8.bf16 %v1759
    %v1840 = vunpack.c.h.s8.bf16 %v1760
    %v1841 = vunpack.c.l.s8.bf16 %v1761
    %v1842 = vunpack.c.l.s8.bf16 %v1762
    %v1843 = vunpack.c.l.s8.bf16 %v1763
    %v1844 = vunpack.c.l.s8.bf16 %v1764
    %v1845 = vunpack.c.h.s8.bf16 %v1761
    %v1846 = vunpack.c.h.s8.bf16 %v1762
    %v1847 = vunpack.c.h.s8.bf16 %v1763
    %v1848 = vunpack.c.h.s8.bf16 %v1764
    %v1849 = vunpack.c.l.s8.bf16 %v1765
    %v1850 = vunpack.c.l.s8.bf16 %v1766
    %v1851 = vunpack.c.l.s8.bf16 %v1767
    %v1852 = vunpack.c.l.s8.bf16 %v1768
    %v1853 = vunpack.c.h.s8.bf16 %v1765
    %v1854 = vunpack.c.h.s8.bf16 %v1766
    %v1855 = vunpack.c.h.s8.bf16 %v1767
    %v1856 = vunpack.c.h.s8.bf16 %v1768
    %v1857 = vunpack.c.l.s8.bf16 %v1769
    %v1858 = vunpack.c.l.s8.bf16 %v1770
    %v1859 = vunpack.c.l.s8.bf16 %v1771
    %v1860 = vunpack.c.l.s8.bf16 %v1772
    %v1861 = vunpack.c.h.s8.bf16 %v1769
    %v1862 = vunpack.c.h.s8.bf16 %v1770
    %v1863 = vunpack.c.h.s8.bf16 %v1771
    %v1864 = vunpack.c.h.s8.bf16 %v1772
    %v1865 = vunpack.c.l.s8.bf16 %v1773
    %v1866 = vunpack.c.l.s8.bf16 %v1774
    %v1867 = vunpack.c.l.s8.bf16 %v1775
    %v1868 = vunpack.c.l.s8.bf16 %v1776
    %v1869 = vunpack.c.h.s8.bf16 %v1773
    %v1870 = vunpack.c.h.s8.bf16 %v1774
    %v1871 = vunpack.c.h.s8.bf16 %v1775
    %v1872 = vunpack.c.h.s8.bf16 %v1776
    %v1873 = vunpack.c.l.s8.bf16 %v1777
    %v1874 = vunpack.c.l.s8.bf16 %v1778
    %v1875 = vunpack.c.l.s8.bf16 %v1779
    %v1876 = vunpack.c.l.s8.bf16 %v1780
    %v1877 = vunpack.c.h.s8.bf16 %v1777
    %v1878 = vunpack.c.h.s8.bf16 %v1778
    %v1879 = vunpack.c.h.s8.bf16 %v1779
    %v1880 = vunpack.c.h.s8.bf16 %v1780
    %v1881 = vunpack.c.l.s8.bf16 %v1781
    %v1882 = vunpack.c.l.s8.bf16 %v1782
    %v1883 = vunpack.c.l.s8.bf16 %v1783
    %v1884 = vunpack.c.l.s8.bf16 %v1784
    %v1885 = vunpack.c.h.s8.bf16 %v1781
    %v1886 = vunpack.c.h.s8.bf16 %v1782
    %v1887 = vunpack.c.h.s8.bf16 %v1783
    %v1888 = vunpack.c.h.s8.bf16 %v1784
    %v1889 = vunpack.c.l.s8.bf16 %v1785
    %v1890 = vunpack.c.l.s8.bf16 %v1786
    %v1891 = vunpack.c.l.s8.bf16 %v1787
    %v1892 = vunpack.c.l.s8.bf16 %v1788
    %v1893 = vunpack.c.h.s8.bf16 %v1785
    %v1894 = vunpack.c.h.s8.bf16 %v1786
    %v1895 = vunpack.c.h.s8.bf16 %v1787
    %v1896 = vunpack.c.h.s8.bf16 %v1788
    %v1897 = vunpack.c.l.s8.bf16 %v1789
    %v1898 = vunpack.c.l.s8.bf16 %v1790
    %v1899 = vunpack.c.l.s8.bf16 %v1791
    %v1900 = vunpack.c.l.s8.bf16 %v1792
    %v1901 = vunpack.c.h.s8.bf16 %v1789
    %v1902 = vunpack.c.h.s8.bf16 %v1790
    %v1903 = vunpack.c.h.s8.bf16 %v1791
    %v1904 = vunpack.c.h.s8.bf16 %v1792
    %v1905 = vunpack.c.l.s8.bf16 %v1793
    %v1906 = vunpack.c.l.s8.bf16 %v1794
    %v1907 = vunpack.c.l.s8.bf16 %v1795
    %v1908 = vunpack.c.l.s8.bf16 %v1796
    %v1909 = vunpack.c.h.s8.bf16 %v1793
    %v1910 = vunpack.c.h.s8.bf16 %v1794
    %v1911 = vunpack.c.h.s8.bf16 %v1795
    %v1912 = vunpack.c.h.s8.bf16 %v1796
    %v1913 = vunpack.c.l.s8.bf16 %v1797
    %v1914 = vunpack.c.l.s8.bf16 %v1798
    %v1915 = vunpack.c.l.s8.bf16 %v1799
    %v1916 = vunpack.c.l.s8.bf16 %v1800
    %v1917 = vunpack.c.h.s8.bf16 %v1797
    %v1918 = vunpack.c.h.s8.bf16 %v1798
    %v1919 = vunpack.c.h.s8.bf16 %v1799
    %v1920 = vunpack.c.h.s8.bf16 %v1800
    %v1921 = vunpack.c.l.s8.bf16 %v1801
    %v1922 = vunpack.c.l.s8.bf16 %v1802
    %v1923 = vunpack.c.l.s8.bf16 %v1803
    %v1924 = vunpack.c.l.s8.bf16 %v1804
    %v1925 = vunpack.c.h.s8.bf16 %v1801
    %v1926 = vunpack.c.h.s8.bf16 %v1802
    %v1927 = vunpack.c.h.s8.bf16 %v1803
    %v1928 = vunpack.c.h.s8.bf16 %v1804
    %v1929 = vunpack.c.l.s8.bf16 %v1805
    %v1930 = vunpack.c.l.s8.bf16 %v1806
    %v1931 = vunpack.c.l.s8.bf16 %v1807
    %v1932 = vunpack.c.l.s8.bf16 %v1808
    %v1933 = vunpack.c.h.s8.bf16 %v1805
    %v1934 = vunpack.c.h.s8.bf16 %v1806
    %v1935 = vunpack.c.h.s8.bf16 %v1807
    %v1936 = vunpack.c.h.s8.bf16 %v1808
    %1937 = vmatprep.subr.bf16.mxu0 %v1838
    %1938 = vmatpush1.bf16.msra.mxu0 %v1837
    %1939 = vmatprep.subr.bf16.mxu0 %v1834
    %1940 = vmatpush1.bf16.msra.mxu0 %v1833
    %1941 = vmatprep.subr.bf16.mxu0 %v1830
    %1942 = vmatpush1.bf16.msra.mxu0 %v1829
    %1943 = vmatprep.subr.bf16.mxu0 %v1826
    %1944 = vmatpush1.bf16.msra.mxu0 %v1825
    %1945 = vmatprep.subr.bf16.mxu0 %v1822
    %1946 = vmatpush1.bf16.msra.mxu0 %v1821
    %1947 = vmatprep.subr.bf16.mxu0 %v1818
    %1948 = vmatpush1.bf16.msra.mxu0 %v1817
    %1949 = vmatprep.subr.bf16.mxu0 %v1814
    %1950 = vmatpush1.bf16.msra.mxu0 %v1813
    %1951 = vmatprep.subr.bf16.mxu0 %v1810
    %1952 = vmatpush1.bf16.msra.mxu0 %v1809
    %1953 = vmatprep.subr.bf16.mxu0 %v1870
    %1954 = vmatpush2.bf16.msra.mxu0 %v1869
    %1955 = vmatprep.subr.bf16.mxu0 %v1866
    %1956 = vmatpush2.bf16.msra.mxu0 %v1865
    %1957 = vmatprep.subr.bf16.mxu0 %v1862
    %1958 = vmatpush2.bf16.msra.mxu0 %v1861
    %1959 = vmatprep.subr.bf16.mxu0 %v1858
    %1960 = vmatpush2.bf16.msra.mxu0 %v1857
    %1961 = vmatprep.subr.bf16.mxu0 %v1854
    %1962 = vmatpush2.bf16.msra.mxu0 %v1853
    %1963 = vmatprep.subr.bf16.mxu0 %v1850
    %1964 = vmatpush2.bf16.msra.mxu0 %v1849
    %1965 = vmatprep.subr.bf16.mxu0 %v1846
    %1966 = vmatpush2.bf16.msra.mxu0 %v1845
    %1967 = vmatprep.subr.bf16.mxu0 %v1842
    %1968 = vmatpush2.bf16.msra.mxu0 %v1841
    %1969 = vmatprep.mubr.bf16.mxu0 %v1742
    %1970 = vmatmul.mubr.bf16.gmra.mxu0 %v1741
    %v1971 = vpop.f32.mrf.mxu0
    %v1972 = vadd.f32 0.0, %v1971
    %v1973 = vpop.f32.mrf.mxu0
    %v1974 = vadd.f32 0.0, %v1973
    %v1975 = vpop.f32.mrf.mxu0
    %v1976 = vpop.f32.mrf.mxu0
    %1977 = vdwg.mxu0
    %1978 = vmatprep.subr.bf16.mxu0 %v1902
    %1979 = vmatpush1.bf16.msra.mxu0 %v1901
    %1980 = vmatprep.subr.bf16.mxu0 %v1898
    %1981 = vmatpush1.bf16.msra.mxu0 %v1897
    %1982 = vmatprep.subr.bf16.mxu0 %v1894
    %1983 = vmatpush1.bf16.msra.mxu0 %v1893
    %1984 = vmatprep.subr.bf16.mxu0 %v1890
    %1985 = vmatpush1.bf16.msra.mxu0 %v1889
    %1986 = vmatprep.subr.bf16.mxu0 %v1886
    %1987 = vmatpush1.bf16.msra.mxu0 %v1885
    %1988 = vmatprep.subr.bf16.mxu0 %v1882
    %1989 = vmatpush1.bf16.msra.mxu0 %v1881
    %1990 = vmatprep.subr.bf16.mxu0 %v1878
    %1991 = vmatpush1.bf16.msra.mxu0 %v1877
    %1992 = vmatprep.subr.bf16.mxu0 %v1874
    %1993 = vmatpush1.bf16.msra.mxu0 %v1873
    %1994 = vmatprep.subr.bf16.mxu0 %v1934
    %1995 = vmatpush2.bf16.msra.mxu0 %v1933
    %1996 = vmatprep.subr.bf16.mxu0 %v1930
    %1997 = vmatpush2.bf16.msra.mxu0 %v1929
    %1998 = vmatprep.subr.bf16.mxu0 %v1926
    %1999 = vmatpush2.bf16.msra.mxu0 %v1925
    %2000 = vmatprep.subr.bf16.mxu0 %v1922
    %2001 = vmatpush2.bf16.msra.mxu0 %v1921
    %2002 = vmatprep.subr.bf16.mxu0 %v1918
    %2003 = vmatpush2.bf16.msra.mxu0 %v1917
    %2004 = vmatprep.subr.bf16.mxu0 %v1914
    %2005 = vmatpush2.bf16.msra.mxu0 %v1913
    %2006 = vmatprep.subr.bf16.mxu0 %v1910
    %2007 = vmatpush2.bf16.msra.mxu0 %v1909
    %2008 = vmatprep.subr.bf16.mxu0 %v1906
    %2009 = vmatpush2.bf16.msra.mxu0 %v1905
    %2010 = vmatprep.mubr.bf16.mxu0 %v1744
    %2011 = vmatmul.mubr.bf16.gmra.mxu0 %v1743
    %v2012 = vpop.f32.mrf.mxu0
    %v2013 = vadd.f32 %v1972, %v2012
    %v2014 = vpop.f32.mrf.mxu0
    %v2015 = vadd.f32 %v1974, %v2014
    %v2016 = vpop.f32.mrf.mxu0
    %v2017 = vpop.f32.mrf.mxu0
    %2018 = vdwg.mxu0
    %2019 = vmatprep.subr.bf16.mxu0 %v1840
    %2020 = vmatpush1.bf16.msra.mxu0 %v1839
    %2021 = vmatprep.subr.bf16.mxu0 %v1836
    %2022 = vmatpush1.bf16.msra.mxu0 %v1835
    %2023 = vmatprep.subr.bf16.mxu0 %v1832
    %2024 = vmatpush1.bf16.msra.mxu0 %v1831
    %2025 = vmatprep.subr.bf16.mxu0 %v1828
    %2026 = vmatpush1.bf16.msra.mxu0 %v1827
    %2027 = vmatprep.subr.bf16.mxu0 %v1824
    %2028 = vmatpush1.bf16.msra.mxu0 %v1823
    %2029 = vmatprep.subr.bf16.mxu0 %v1820
    %2030 = vmatpush1.bf16.msra.mxu0 %v1819
    %2031 = vmatprep.subr.bf16.mxu0 %v1816
    %2032 = vmatpush1.bf16.msra.mxu0 %v1815
    %2033 = vmatprep.subr.bf16.mxu0 %v1812
    %2034 = vmatpush1.bf16.msra.mxu0 %v1811
    %2035 = vmatprep.subr.bf16.mxu0 %v1872
    %2036 = vmatpush2.bf16.msra.mxu0 %v1871
    %2037 = vmatprep.subr.bf16.mxu0 %v1868
    %2038 = vmatpush2.bf16.msra.mxu0 %v1867
    %2039 = vmatprep.subr.bf16.mxu0 %v1864
    %2040 = vmatpush2.bf16.msra.mxu0 %v1863
    %2041 = vmatprep.subr.bf16.mxu0 %v1860
    %2042 = vmatpush2.bf16.msra.mxu0 %v1859
    %2043 = vmatprep.subr.bf16.mxu0 %v1856
    %2044 = vmatpush2.bf16.msra.mxu0 %v1855
    %2045 = vmatprep.subr.bf16.mxu0 %v1852
    %2046 = vmatpush2.bf16.msra.mxu0 %v1851
    %2047 = vmatprep.subr.bf16.mxu0 %v1848
    %2048 = vmatpush2.bf16.msra.mxu0 %v1847
    %2049 = vmatprep.subr.bf16.mxu0 %v1844
    %2050 = vmatpush2.bf16.msra.mxu0 %v1843
    %2051 = vmatprep.mubr.bf16.mxu0 %v1742
    %2052 = vmatmul.mubr.bf16.gmra.mxu0 %v1741
    %v2053 = vpop.f32.mrf.mxu0
    %v2054 = vadd.f32 0.0, %v2053
    %v2055 = vpop.f32.mrf.mxu0
    %v2056 = vadd.f32 0.0, %v2055
    %v2057 = vpop.f32.mrf.mxu0
    %v2058 = vpop.f32.mrf.mxu0
    %2059 = vdwg.mxu0
    %2060 = vmatprep.subr.bf16.mxu0 %v1904
    %2061 = vmatpush1.bf16.msra.mxu0 %v1903
    %2062 = vmatprep.subr.bf16.mxu0 %v1900
    %2063 = vmatpush1.bf16.msra.mxu0 %v1899
    %2064 = vmatprep.subr.bf16.mxu0 %v1896
    %2065 = vmatpush1.bf16.msra.mxu0 %v1895
    %2066 = vmatprep.subr.bf16.mxu0 %v1892
    %2067 = vmatpush1.bf16.msra.mxu0 %v1891
    %2068 = vmatprep.subr.bf16.mxu0 %v1888
    %2069 = vmatpush1.bf16.msra.mxu0 %v1887
    %2070 = vmatprep.subr.bf16.mxu0 %v1884
    %2071 = vmatpush1.bf16.msra.mxu0 %v1883
    %2072 = vmatprep.subr.bf16.mxu0 %v1880
    %2073 = vmatpush1.bf16.msra.mxu0 %v1879
    %2074 = vmatprep.subr.bf16.mxu0 %v1876
    %2075 = vmatpush1.bf16.msra.mxu0 %v1875
    %2076 = vmatprep.subr.bf16.mxu0 %v1936
    %2077 = vmatpush2.bf16.msra.mxu0 %v1935
    %2078 = vmatprep.subr.bf16.mxu0 %v1932
    %2079 = vmatpush2.bf16.msra.mxu0 %v1931
    %2080 = vmatprep.subr.bf16.mxu0 %v1928
    %2081 = vmatpush2.bf16.msra.mxu0 %v1927
    %2082 = vmatprep.subr.bf16.mxu0 %v1924
    %2083 = vmatpush2.bf16.msra.mxu0 %v1923
    %2084 = vmatprep.subr.bf16.mxu0 %v1920
    %2085 = vmatpush2.bf16.msra.mxu0 %v1919
    %2086 = vmatprep.subr.bf16.mxu0 %v1916
    %2087 = vmatpush2.bf16.msra.mxu0 %v1915
    %2088 = vmatprep.subr.bf16.mxu0 %v1912
    %2089 = vmatpush2.bf16.msra.mxu0 %v1911
    %2090 = vmatprep.subr.bf16.mxu0 %v1908
    %2091 = vmatpush2.bf16.msra.mxu0 %v1907
    %2092 = vmatprep.mubr.bf16.mxu0 %v1744
    %2093 = vmatmul.mubr.bf16.gmra.mxu0 %v1743
    %v2094 = vpop.f32.mrf.mxu0
    %v2095 = vadd.f32 %v2054, %v2094
    %v2096 = vpop.f32.mrf.mxu0
    %v2097 = vadd.f32 %v2056, %v2096
    %v2098 = vpop.f32.mrf.mxu0
    %v2099 = vpop.f32.mrf.mxu0
    %2100 = vdwg.mxu0
    %v2101 = vld [vmem:[%s5] sm:$0xf]
    %v2103 = vlaneseq
    %v2104 = vshrl.u32 %v2103, 7
    %v2105 = vsub.s32 0, %v2104
    %v2106 = vrot.slane %v2101, %v2105
    %v2107 = vlaneseq
    %v2108 = vshrl.u32 %v2107, 7
    %v2109 = vsub.s32 1, %v2108
    %v2110 = vrot.slane %v2101, %v2109
    %v2111 = vlaneseq
    %v2112 = vshrl.u32 %v2111, 7
    %v2113 = vsub.s32 2, %v2112
    %v2114 = vrot.slane %v2101, %v2113
    %v2115 = vlaneseq
    %v2116 = vshrl.u32 %v2115, 7
    %v2117 = vsub.s32 3, %v2116
    %v2118 = vrot.slane %v2101, %v2117
    %v2123 = vmul.f32 %v2013, %v2106
    %v2124 = vmul.f32 %v2015, %v2110
    %v2125 = vmul.f32 %v2095, %v2114
    %v2126 = vmul.f32 %v2097, %v2118
    %v2127 = vld [vmem:[%s6] sm:$0xf]
    %v2129 = vlaneseq
    %v2130 = vshrl.u32 %v2129, 7
    %v2131 = vsub.s32 0, %v2130
    %v2132 = vrot.slane %v2127, %v2131
    %v2133 = vlaneseq
    %v2134 = vshrl.u32 %v2133, 7
    %v2135 = vsub.s32 1, %v2134
    %v2136 = vrot.slane %v2127, %v2135
    %v2137 = vlaneseq
    %v2138 = vshrl.u32 %v2137, 7
    %v2139 = vsub.s32 2, %v2138
    %v2140 = vrot.slane %v2127, %v2139
    %v2141 = vlaneseq
    %v2142 = vshrl.u32 %v2141, 7
    %v2143 = vsub.s32 3, %v2142
    %v2144 = vrot.slane %v2127, %v2143
    %v2149 = vadd.f32 %v2123, %v2132
    %v2150 = vadd.f32 %v2124, %v2136
    %v2151 = vadd.f32 %v2125, %v2140
    %v2152 = vadd.f32 %v2126, %v2144
    %v2153 = vmax.f32 %v2149, 0.0
    %v2154 = vmax.f32 %v2150, 0.0
    %v2155 = vmax.f32 %v2151, 0.0
    %v2156 = vmax.f32 %v2152, 0.0
    %v2157 = vpack.c.bf16 %v2153, %v2153
    %v2158 = vpack.c.bf16 %v2154, %v2154
    %v2159 = vpack.c.bf16 %v2155, %v2155
    %v2160 = vpack.c.bf16 %v2156, %v2156
    %v2161 = vld [vmem:[#allocation5] sm:$0xff]
    %v2162 = vld [vmem:[#allocation5 + $0x8] sm:$0xff]
    %v2163 = vld [vmem:[#allocation5 + $0x10] sm:$0xff]
    %v2164 = vld [vmem:[#allocation5 + $0x18] sm:$0xff]
    %v2165 = vld [vmem:[#allocation5 + $0x20] sm:$0xff]
    %v2166 = vld [vmem:[#allocation5 + $0x28] sm:$0xff]
    %v2167 = vld [vmem:[#allocation5 + $0x30] sm:$0xff]
    %v2168 = vld [vmem:[#allocation5 + $0x38] sm:$0xff]
    %v2169 = vld [vmem:[#allocation5 + $0x40] sm:$0xff]
    %v2170 = vld [vmem:[#allocation5 + $0x48] sm:$0xff]
    %v2171 = vld [vmem:[#allocation5 + $0x50] sm:$0xff]
    %v2172 = vld [vmem:[#allocation5 + $0x58] sm:$0xff]
    %v2173 = vld [vmem:[#allocation5 + $0x60] sm:$0xff]
    %v2174 = vld [vmem:[#allocation5 + $0x68] sm:$0xff]
    %v2175 = vld [vmem:[#allocation5 + $0x70] sm:$0xff]
    %v2176 = vld [vmem:[#allocation5 + $0x78] sm:$0xff]
    %v2177 = vunpack.c.l.s8.bf16 %v2161
    %v2178 = vunpack.c.h.s8.bf16 %v2161
    %v2179 = vunpack.c.l.s8.bf16 %v2162
    %v2180 = vunpack.c.h.s8.bf16 %v2162
    %v2181 = vunpack.c.l.s8.bf16 %v2163
    %v2182 = vunpack.c.h.s8.bf16 %v2163
    %v2183 = vunpack.c.l.s8.bf16 %v2164
    %v2184 = vunpack.c.h.s8.bf16 %v2164
    %v2185 = vunpack.c.l.s8.bf16 %v2165
    %v2186 = vunpack.c.h.s8.bf16 %v2165
    %v2187 = vunpack.c.l.s8.bf16 %v2166
    %v2188 = vunpack.c.h.s8.bf16 %v2166
    %v2189 = vunpack.c.l.s8.bf16 %v2167
    %v2190 = vunpack.c.h.s8.bf16 %v2167
    %v2191 = vunpack.c.l.s8.bf16 %v2168
    %v2192 = vunpack.c.h.s8.bf16 %v2168
    %v2193 = vunpack.c.l.s8.bf16 %v2169
    %v2194 = vunpack.c.h.s8.bf16 %v2169
    %v2195 = vunpack.c.l.s8.bf16 %v2170
    %v2196 = vunpack.c.h.s8.bf16 %v2170
    %v2197 = vunpack.c.l.s8.bf16 %v2171
    %v2198 = vunpack.c.h.s8.bf16 %v2171
    %v2199 = vunpack.c.l.s8.bf16 %v2172
    %v2200 = vunpack.c.h.s8.bf16 %v2172
    %v2201 = vunpack.c.l.s8.bf16 %v2173
    %v2202 = vunpack.c.h.s8.bf16 %v2173
    %v2203 = vunpack.c.l.s8.bf16 %v2174
    %v2204 = vunpack.c.h.s8.bf16 %v2174
    %v2205 = vunpack.c.l.s8.bf16 %v2175
    %v2206 = vunpack.c.h.s8.bf16 %v2175
    %v2207 = vunpack.c.l.s8.bf16 %v2176
    %v2208 = vunpack.c.h.s8.bf16 %v2176
    %2209 = vmatprep.subr.bf16.mxu0 0
    %2210 = vmatpush1.bf16.msra.mxu0 %v2184
    %2211 = vmatprep.subr.bf16.mxu0 0
    %2212 = vmatpush1.bf16.msra.mxu0 %v2183
    %2213 = vmatprep.subr.bf16.mxu0 0
    %2214 = vmatpush1.bf16.msra.mxu0 %v2182
    %2215 = vmatprep.subr.bf16.mxu0 0
    %2216 = vmatpush1.bf16.msra.mxu0 %v2181
    %2217 = vmatprep.subr.bf16.mxu0 0
    %2218 = vmatpush1.bf16.msra.mxu0 %v2180
    %2219 = vmatprep.subr.bf16.mxu0 0
    %2220 = vmatpush1.bf16.msra.mxu0 %v2179
    %2221 = vmatprep.subr.bf16.mxu0 0
    %2222 = vmatpush1.bf16.msra.mxu0 %v2178
    %2223 = vmatprep.subr.bf16.mxu0 0
    %2224 = vmatpush1.bf16.msra.mxu0 %v2177
    %2225 = vmatprep.subr.bf16.mxu0 0
    %2226 = vmatpush2.bf16.msra.mxu0 %v2192
    %2227 = vmatprep.subr.bf16.mxu0 0
    %2228 = vmatpush2.bf16.msra.mxu0 %v2191
    %2229 = vmatprep.subr.bf16.mxu0 0
    %2230 = vmatpush2.bf16.msra.mxu0 %v2190
    %2231 = vmatprep.subr.bf16.mxu0 0
    %2232 = vmatpush2.bf16.msra.mxu0 %v2189
    %2233 = vmatprep.subr.bf16.mxu0 0
    %2234 = vmatpush2.bf16.msra.mxu0 %v2188
    %2235 = vmatprep.subr.bf16.mxu0 0
    %2236 = vmatpush2.bf16.msra.mxu0 %v2187
    %2237 = vmatprep.subr.bf16.mxu0 0
    %2238 = vmatpush2.bf16.msra.mxu0 %v2186
    %2239 = vmatprep.subr.bf16.mxu0 0
    %2240 = vmatpush2.bf16.msra.mxu0 %v2185
    %2241 = vmatprep.mubr.bf16.mxu0 %v2158
    %2242 = vmatmul.mubr.bf16.gmra.mxu0 %v2157
    %v2243 = vpop.f32.mrf.mxu0
    %v2244 = vadd.f32 0.0, %v2243
    %v2245 = vpop.f32.mrf.mxu0
    %v2246 = vpop.f32.mrf.mxu0
    %v2247 = vpop.f32.mrf.mxu0
    %2248 = vdwg.mxu0
    %2249 = vmatprep.subr.bf16.mxu0 0
    %2250 = vmatpush1.bf16.msra.mxu0 %v2200
    %2251 = vmatprep.subr.bf16.mxu0 0
    %2252 = vmatpush1.bf16.msra.mxu0 %v2199
    %2253 = vmatprep.subr.bf16.mxu0 0
    %2254 = vmatpush1.bf16.msra.mxu0 %v2198
    %2255 = vmatprep.subr.bf16.mxu0 0
    %2256 = vmatpush1.bf16.msra.mxu0 %v2197
    %2257 = vmatprep.subr.bf16.mxu0 0
    %2258 = vmatpush1.bf16.msra.mxu0 %v2196
    %2259 = vmatprep.subr.bf16.mxu0 0
    %2260 = vmatpush1.bf16.msra.mxu0 %v2195
    %2261 = vmatprep.subr.bf16.mxu0 0
    %2262 = vmatpush1.bf16.msra.mxu0 %v2194
    %2263 = vmatprep.subr.bf16.mxu0 0
    %2264 = vmatpush1.bf16.msra.mxu0 %v2193
    %2265 = vmatprep.subr.bf16.mxu0 0
    %2266 = vmatpush2.bf16.msra.mxu0 %v2208
    %2267 = vmatprep.subr.bf16.mxu0 0
    %2268 = vmatpush2.bf16.msra.mxu0 %v2207
    %2269 = vmatprep.subr.bf16.mxu0 0
    %2270 = vmatpush2.bf16.msra.mxu0 %v2206
    %2271 = vmatprep.subr.bf16.mxu0 0
    %2272 = vmatpush2.bf16.msra.mxu0 %v2205
    %2273 = vmatprep.subr.bf16.mxu0 0
    %2274 = vmatpush2.bf16.msra.mxu0 %v2204
    %2275 = vmatprep.subr.bf16.mxu0 0
    %2276 = vmatpush2.bf16.msra.mxu0 %v2203
    %2277 = vmatprep.subr.bf16.mxu0 0
    %2278 = vmatpush2.bf16.msra.mxu0 %v2202
    %2279 = vmatprep.subr.bf16.mxu0 0
    %2280 = vmatpush2.bf16.msra.mxu0 %v2201
    %2281 = vmatprep.mubr.bf16.mxu0 %v2160
    %2282 = vmatmul.mubr.bf16.gmra.mxu0 %v2159
    %v2283 = vpop.f32.mrf.mxu0
    %v2284 = vadd.f32 %v2244, %v2283
    %v2285 = vpop.f32.mrf.mxu0
    %v2286 = vpop.f32.mrf.mxu0
    %v2287 = vpop.f32.mrf.mxu0
    %2288 = vdwg.mxu0
    %v2289 = vld [vmem:[%s8] sm:$0x1]
    %v2291 = vlaneseq
    %v2292 = vshrl.u32 %v2291, 7
    %v2293 = vsub.s32 0, %v2292
    %v2294 = vrot.slane %v2289, %v2293
    %v2296 = vmul.f32 %v2284, %v2294
    %v2297 = vld [vmem:[%s9] sm:$0x1]
    %v2299 = vlaneseq
    %v2300 = vshrl.u32 %v2299, 7
    %v2301 = vsub.s32 0, %v2300
    %v2302 = vrot.slane %v2297, %v2301
    %v2304 = vadd.f32 %v2296, %v2302
    %2305 = vst [vmem:[#allocation7] sm:$0xff] %v2304
    // Predicated region
    $region50: #{neural_network_forward.1} parent=1 // pred_check
      _
    $region51: #{neural_network_forward.1} parent=1 // pred_check_branch
      %2307 = sbr.rel (0) target = $region53
    $region52: #{neural_network_forward.1} parent=1 // pred_region
      %s2309 = ssub.s32 128, 128
      %2310 = vsyncadd [#allocation4], %s2309
      %s2312 = sshll.u32 [#allocation7], 4
      %s2313 = int_to_ptr.vmem [resolvable:$true] %s2312
      %2315 = dma.vmem_to_hbm [thread:$0]  %s2313, 128, %s10, [#allocation4]
    $region53: #{neural_network_forward.1} parent=1 // pred_fallthru
      _
    // Predicated region
    $region54: #{neural_network_forward.1} parent=1 // pred_check
      _
    $region55: #{neural_network_forward.1} parent=1 // pred_check_branch
      %2317 = sbr.rel (0) target = $region57
    $region56: #{neural_network_forward.1} parent=1 // pred_region
      %2318 = dma.done [#allocation4], 128
    $region57: #{neural_network_forward.1} parent=1 // pred_fallthru
      _
    %2319 = vsyncpa [#allocation3], 1
    %2320 = vsyncpa [#allocation6], 1
    %2321 = vsyncpa [#allocation4], 1

</llo_original>
